<compile_context>
chip_gen: v7x
topology: tpu7x:2x2x1
jax: 0.10.0
libtpu: 0.0.40
codegen_flags: <defaults>
</compile_context>

<pallas_src>
import functools

import jax
import jax.numpy as jnp
from jax.experimental import pallas as pl
from jax.experimental.pallas import tpu as pltpu


# ----------------------------------------------------------------------------
# Helpers
# ----------------------------------------------------------------------------

def _layer_norm(x, g, b, eps=1e-5):
    """f32 LayerNorm over the last dim, single-pass variance (E[x^2]-E[x]^2)."""
    mean = jnp.mean(x, axis=-1, keepdims=True)
    mean_sq = jnp.mean(x * x, axis=-1, keepdims=True)
    var = jnp.maximum(mean_sq - mean * mean, 0.0)
    return (x - mean) * jax.lax.rsqrt(var + eps) * g + b


# ----------------------------------------------------------------------------
# Fused encoder-layer kernel (one grid step == one batch element)
# ----------------------------------------------------------------------------

def _make_encoder_layer_kernel(num_heads, head_dim, has_kpm, has_attn_mask):
    scaling = head_dim ** -0.5
    H, hd = num_heads, head_dim

    def kernel(*refs):
        it = iter(refs)
        x_ref = next(it)                               # (T, D) f32  (batch squeezed)
        kpm_ref = next(it) if has_kpm else None        # (B, T) int32, pinned
        am_ref = next(it) if has_attn_mask else None   # (T, T) int32, pinned
        (wqkv_ref, bqkv_ref, wo_ref, bo_ref,
         ln1g_ref, ln1b_ref,
         w1_ref, b1_ref, w2_ref, b2_ref,
         ln2g_ref, ln2b_ref,
         o_ref) = it

        T, D = x_ref.shape
        x = x_ref[...]                                 # f32 residual stream

        # ---- fused QKV projection: one bf16 MXU matmul, f32 accumulate -----
        qkv = jnp.dot(x.astype(jnp.bfloat16), wqkv_ref[...],
                      preferred_element_type=jnp.float32) + bqkv_ref[...]  # (T, 3D)
        q = qkv[:, 0:D] * scaling
        k = qkv[:, D:2 * D]
        v = qkv[:, 2 * D:3 * D]

        # ---- head-major (H, T, hd) stacks -> single batched einsums ---------
        qh = jnp.stack([q[:, h * hd:(h + 1) * hd] for h in range(H)],
                       axis=0).astype(jnp.bfloat16)
        kh = jnp.stack([k[:, h * hd:(h + 1) * hd] for h in range(H)],
                       axis=0).astype(jnp.bfloat16)
        vh = jnp.stack([v[:, h * hd:(h + 1) * hd] for h in range(H)],
                       axis=0).astype(jnp.bfloat16)

        s = jnp.einsum('hqd,hkd->hqk', qh, kh,
                       preferred_element_type=jnp.float32)          # (H, T, T) f32

        # ---- additive attention bias built in-kernel, added once ------------
        if has_kpm:
            b_idx = pl.program_id(0)
            kpm_row = kpm_ref[pl.ds(b_idx, 1), :]                   # (1, T) int32
            # finite (-1e9, not -inf) so fully-masked rows stay NaN-free
            s = s + jnp.where(kpm_row > 0, -1e9, 0.0)               # bcast over (H, q)
        if has_attn_mask:
            s = s + jnp.where(am_ref[...] > 0, -1e8, 0.0)           # bcast over H

        # ---- softmax (f32), EUP reciprocal -----------------------------------
        s = s - jnp.max(s, axis=-1, keepdims=True)
        p = jnp.exp(s)
        denom = jnp.sum(p, axis=-1, keepdims=True)                  # >= 1 always
        p = p * pl.reciprocal(denom, approx=True)

        ctx = jnp.einsum('hqk,hkd->hqd', p.astype(jnp.bfloat16), vh,
                         preferred_element_type=jnp.float32)        # (H, T, hd)
        attn = jnp.concatenate([ctx[h] for h in range(H)], axis=-1) # (T, D)

        sa = jnp.dot(attn.astype(jnp.bfloat16), wo_ref[...],
                     preferred_element_type=jnp.float32) + bo_ref[...]

        # ---- residual + LayerNorm 1 (post-norm), f32 ------------------------
        y = _layer_norm(x + sa, ln1g_ref[...], ln1b_ref[...])

        # ---- feed-forward (bf16 MXU operands) --------------------------------
        h1 = jnp.dot(y.astype(jnp.bfloat16), w1_ref[...],
                     preferred_element_type=jnp.float32) + b1_ref[...]
        h1 = jnp.maximum(h1, 0.0)                                   # relu
        f = jnp.dot(h1.astype(jnp.bfloat16), w2_ref[...],
                    preferred_element_type=jnp.float32) + b2_ref[...]

        # ---- residual + LayerNorm 2 (post-norm) ------------------------------
        z = _layer_norm(y + f, ln2g_ref[...], ln2b_ref[...])
        o_ref[...] = z.astype(o_ref.dtype)

    return kernel


# ----------------------------------------------------------------------------
# Wrapper
# ----------------------------------------------------------------------------

def transformer_encoder_layer_forward(x_tbd, params, num_heads,
                                      encoder_padding_mask=None,
                                      attn_mask=None):
    """Post-norm fairseq TransformerEncoderLayer forward.

    x_tbd: (T, B, D) float32
    encoder_padding_mask: optional (B, T), nonzero = key is padding
    attn_mask: optional (T, T) binary, nonzero = exclude src_j for tgt_i
               (converted to additive -1e8, matching masked_fill in the module)
    Returns (T, B, D).
    """
    T, B, D = x_tbd.shape
    head_dim = D // num_heads
    F = params["w1"].shape[1]

    has_kpm = encoder_padding_mask is not None
    has_am = attn_mask is not None

    # One boundary layout change so the kernel sees a leading-batch slab.
    x_btd = jnp.transpose(x_tbd, (1, 0, 2))            # (B, T, D)

    # Matmul weights in bf16 (MXU-native, half the DMA bytes); everything the
    # VPU touches (biases, LN params) stays f32.
    wqkv = params["wqkv"].astype(jnp.bfloat16)
    wo = params["wo"].astype(jnp.bfloat16)
    w1 = params["w1"].astype(jnp.bfloat16)
    w2 = params["w2"].astype(jnp.bfloat16)

    def pinned(shape):                                  # VMEM-resident, same block every step
        return pl.BlockSpec(shape, lambda b: (0,) * len(shape))

    in_specs = [pl.BlockSpec((None, T, D), lambda b: (b, 0, 0))]
    args = [x_btd]
    if has_kpm:
        in_specs.append(pinned((B, T)))
        args.append(encoder_padding_mask.astype(jnp.int32))
    if has_am:
        in_specs.append(pinned((T, T)))
        args.append(attn_mask.astype(jnp.int32))

    weight_args = [wqkv, params["bqkv"], wo, params["bo"],
                   params["ln1_g"], params["ln1_b"],
                   w1, params["b1"], w2, params["b2"],
                   params["ln2_g"], params["ln2_b"]]
    in_specs += [pinned(tuple(w.shape)) for w in weight_args]
    args += weight_args

    N = B * T
    flops = (2 * N * D * 3 * D                    # QKV projection
             + 4 * B * num_heads * T * T * head_dim  # scores + context
             + 2 * N * D * D                      # output projection
             + 4 * N * D * F)                     # fc1 + fc2
    bytes_accessed = (2 * N * D * 4
                      + sum(int(w.size) * w.dtype.itemsize for w in weight_args))
    cost = pl.CostEstimate(flops=int(flops),
                           transcendentals=int(B * num_heads * T * T),
                           bytes_accessed=int(bytes_accessed))

    kernel = _make_encoder_layer_kernel(num_heads, head_dim, has_kpm, has_am)

    out_btd = pl.pallas_call(
        kernel,
        grid=(B,),
        in_specs=in_specs,
        out_specs=pl.BlockSpec((None, T, D), lambda b: (b, 0, 0)),
        out_shape=jax.ShapeDtypeStruct((B, T, D), jnp.float32),
        compiler_params=pltpu.CompilerParams(
            dimension_semantics=("parallel",),          # megacore on v7x
            vmem_limit_bytes=32 * 1024 * 1024),
        cost_estimate=cost,
    )(*args)

    return jnp.transpose(out_btd, (1, 0, 2))            # back to (T, B, D)


# ----------------------------------------------------------------------------
# Deterministic parameter init
# ----------------------------------------------------------------------------

def _init_linear(key, din, dout, scale=0.05):
    kw, kb = jax.random.split(key)
    w = jax.random.normal(kw, (din, dout), jnp.float32) * scale
    b = jax.random.normal(kb, (1, dout), jnp.float32) * scale
    return w, b


def init_params(key, d_model, d_ffn):
    keys = jax.random.split(key, 6)
    wq, bq = _init_linear(keys[0], d_model, d_model)
    wk, bk = _init_linear(keys[1], d_model, d_model)
    wv, bv = _init_linear(keys[2], d_model, d_model)
    wo, bo = _init_linear(keys[3], d_model, d_model)
    w1, b1 = _init_linear(keys[4], d_model, d_ffn)
    w2, b2 = _init_linear(keys[5], d_ffn, d_model)
    return dict(
        # fused QKV projection, columns ordered [Q | K | V]
        wqkv=jnp.concatenate([wq, wk, wv], axis=1),
        bqkv=jnp.concatenate([bq, bk, bv], axis=1),
        wo=wo, bo=bo,
        w1=w1, b1=b1, w2=w2, b2=b2,
        ln1_g=jnp.ones((1, d_model), jnp.float32),
        ln1_b=jnp.zeros((1, d_model), jnp.float32),
        ln2_g=jnp.ones((1, d_model), jnp.float32),
        ln2_b=jnp.zeros((1, d_model), jnp.float32),
    )


# ----------------------------------------------------------------------------
# Main
# ----------------------------------------------------------------------------

if __name__ == "__main__":
    T, B, D = 8, 2, 32          # (seq_len, batch, encoder_embed_dim)
    H = 4                       # encoder_attention_heads (head_dim = 8)
    F = 64                      # encoder_ffn_embed_dim

    key = jax.random.PRNGKey(0)
    k_x, k_p = jax.random.split(key, 2)

    x = jax.random.normal(k_x, (T, B, D), jnp.float32)
    params = init_params(k_p, D, F)

    # Padding mask: last token of batch element 1 is padding.
    pad_mask = jnp.zeros((B, T), jnp.int32).at[1, T - 1].set(1)

    fwd = jax.jit(functools.partial(transformer_encoder_layer_forward,
                                    num_heads=H))
    out = fwd(x, params, encoder_padding_mask=pad_mask, attn_mask=None)
    jax.block_until_ready(out)

    assert out.shape == (T, B, D)
    assert bool(jnp.all(jnp.isfinite(out)))
    print("KERNEL_OK")
</pallas_src>

<mosaic_0001>
module attributes {stable_mosaic.version = 11 : i64} {
  func.func @kernel(%arg0: i32, %arg1: memref<1x8x32xf32, #tpu.memory_space<vmem>>, %arg2: memref<2x8xi32, #tpu.memory_space<vmem>>, %arg3: memref<32x96xbf16, #tpu.memory_space<vmem>>, %arg4: memref<1x96xf32, #tpu.memory_space<vmem>>, %arg5: memref<32x32xbf16, #tpu.memory_space<vmem>>, %arg6: memref<1x32xf32, #tpu.memory_space<vmem>>, %arg7: memref<1x32xf32, #tpu.memory_space<vmem>>, %arg8: memref<1x32xf32, #tpu.memory_space<vmem>>, %arg9: memref<32x64xbf16, #tpu.memory_space<vmem>>, %arg10: memref<1x64xf32, #tpu.memory_space<vmem>>, %arg11: memref<64x32xbf16, #tpu.memory_space<vmem>>, %arg12: memref<1x32xf32, #tpu.memory_space<vmem>>, %arg13: memref<1x32xf32, #tpu.memory_space<vmem>>, %arg14: memref<1x32xf32, #tpu.memory_space<vmem>>, %arg15: memref<1x8x32xf32, #tpu.memory_space<vmem>>) attributes {dimension_semantics = [#tpu.dimension_semantics<parallel>], iteration_bounds = array<i64: 2>, scalar_prefetch = 0 : i64, scratch_operands = 0 : i64, tpu.core_type = #tpu.core_type<tc>, window_params = [{transform_indices = @transform_0, window_bounds = array<i64: 1, 8, 32>}, {pipeline_mode = #tpu.pipeline_mode<synchronous>, transform_indices = @transform_1, window_bounds = array<i64: 2, 8>}, {pipeline_mode = #tpu.pipeline_mode<synchronous>, transform_indices = @transform_2, window_bounds = array<i64: 32, 96>}, {pipeline_mode = #tpu.pipeline_mode<synchronous>, transform_indices = @transform_3, window_bounds = array<i64: 1, 96>}, {pipeline_mode = #tpu.pipeline_mode<synchronous>, transform_indices = @transform_4, window_bounds = array<i64: 32, 32>}, {pipeline_mode = #tpu.pipeline_mode<synchronous>, transform_indices = @transform_5, window_bounds = array<i64: 1, 32>}, {pipeline_mode = #tpu.pipeline_mode<synchronous>, transform_indices = @transform_6, window_bounds = array<i64: 1, 32>}, {pipeline_mode = #tpu.pipeline_mode<synchronous>, transform_indices = @transform_7, window_bounds = array<i64: 1, 32>}, {pipeline_mode = #tpu.pipeline_mode<synchronous>, transform_indices = @transform_8, window_bounds = array<i64: 32, 64>}, {pipeline_mode = #tpu.pipeline_mode<synchronous>, transform_indices = @transform_9, window_bounds = array<i64: 1, 64>}, {pipeline_mode = #tpu.pipeline_mode<synchronous>, transform_indices = @transform_10, window_bounds = array<i64: 64, 32>}, {pipeline_mode = #tpu.pipeline_mode<synchronous>, transform_indices = @transform_11, window_bounds = array<i64: 1, 32>}, {pipeline_mode = #tpu.pipeline_mode<synchronous>, transform_indices = @transform_12, window_bounds = array<i64: 1, 32>}, {pipeline_mode = #tpu.pipeline_mode<synchronous>, transform_indices = @transform_13, window_bounds = array<i64: 1, 32>}, {transform_indices = @transform_14, window_bounds = array<i64: 1, 8, 32>}]} {
    %c0 = arith.constant 0 : index
    %c0_0 = arith.constant 0 : index
    %c0_1 = arith.constant 0 : index
    %0 = vector.load %arg1[%c0, %c0_0, %c0_1] : memref<1x8x32xf32, #tpu.memory_space<vmem>>, vector<1x8x32xf32>
    %1 = vector.shape_cast %0 : vector<1x8x32xf32> to vector<8x32xf32>
    %2 = arith.truncf %1 : vector<8x32xf32> to vector<8x32xbf16>
    %c0_2 = arith.constant 0 : index
    %c0_3 = arith.constant 0 : index
    %3 = vector.load %arg3[%c0_2, %c0_3] : memref<32x96xbf16, #tpu.memory_space<vmem>>, vector<32x96xbf16>
    %cst = arith.constant dense<0.000000e+00> : vector<8x96xf32>
    %4 = tpu.matmul %2, %3, %cst {dimension_numbers = #tpu.dot_dimension_numbers<[1], [0], [0], [1], [0, 0, 1, 1], [], []>} : vector<8x32xbf16>, vector<32x96xbf16>, vector<8x96xf32> -> vector<8x96xf32>
    %c0_4 = arith.constant 0 : index
    %c0_5 = arith.constant 0 : index
    %5 = vector.load %arg4[%c0_4, %c0_5] : memref<1x96xf32, #tpu.memory_space<vmem>>, vector<1x96xf32>
    %6 = vector.broadcast %5 : vector<1x96xf32> to vector<8x96xf32>
    %7 = arith.addf %4, %6 : vector<8x96xf32>
    %8 = vector.extract_strided_slice %7 {offsets = [0, 0], sizes = [8, 32], strides = [1, 1]} : vector<8x96xf32> to vector<8x32xf32>
    %cst_6 = arith.constant 0.353553385 : f32
    %9 = vector.broadcast %cst_6 : f32 to vector<8x32xf32>
    %10 = arith.mulf %8, %9 : vector<8x32xf32>
    %11 = vector.extract_strided_slice %7 {offsets = [0, 32], sizes = [8, 32], strides = [1, 1]} : vector<8x96xf32> to vector<8x32xf32>
    %12 = vector.extract_strided_slice %7 {offsets = [0, 64], sizes = [8, 32], strides = [1, 1]} : vector<8x96xf32> to vector<8x32xf32>
    %13 = vector.extract_strided_slice %10 {offsets = [0, 0], sizes = [8, 8], strides = [1, 1]} : vector<8x32xf32> to vector<8x8xf32>
    %14 = vector.extract_strided_slice %10 {offsets = [0, 8], sizes = [8, 8], strides = [1, 1]} : vector<8x32xf32> to vector<8x8xf32>
    %15 = vector.extract_strided_slice %10 {offsets = [0, 16], sizes = [8, 8], strides = [1, 1]} : vector<8x32xf32> to vector<8x8xf32>
    %16 = vector.extract_strided_slice %10 {offsets = [0, 24], sizes = [8, 8], strides = [1, 1]} : vector<8x32xf32> to vector<8x8xf32>
    %17 = vector.shape_cast %13 : vector<8x8xf32> to vector<1x8x8xf32>
    %18 = vector.shape_cast %14 : vector<8x8xf32> to vector<1x8x8xf32>
    %19 = vector.shape_cast %15 : vector<8x8xf32> to vector<1x8x8xf32>
    %20 = vector.shape_cast %16 : vector<8x8xf32> to vector<1x8x8xf32>
    %21 = tpu.concatenate %17, %18, %19, %20 in 0 : vector<1x8x8xf32>, vector<1x8x8xf32>, vector<1x8x8xf32>, vector<1x8x8xf32> -> vector<4x8x8xf32>
    %22 = arith.truncf %21 : vector<4x8x8xf32> to vector<4x8x8xbf16>
    %23 = vector.extract_strided_slice %11 {offsets = [0, 0], sizes = [8, 8], strides = [1, 1]} : vector<8x32xf32> to vector<8x8xf32>
    %24 = vector.extract_strided_slice %11 {offsets = [0, 8], sizes = [8, 8], strides = [1, 1]} : vector<8x32xf32> to vector<8x8xf32>
    %25 = vector.extract_strided_slice %11 {offsets = [0, 16], sizes = [8, 8], strides = [1, 1]} : vector<8x32xf32> to vector<8x8xf32>
    %26 = vector.extract_strided_slice %11 {offsets = [0, 24], sizes = [8, 8], strides = [1, 1]} : vector<8x32xf32> to vector<8x8xf32>
    %27 = vector.shape_cast %23 : vector<8x8xf32> to vector<1x8x8xf32>
    %28 = vector.shape_cast %24 : vector<8x8xf32> to vector<1x8x8xf32>
    %29 = vector.shape_cast %25 : vector<8x8xf32> to vector<1x8x8xf32>
    %30 = vector.shape_cast %26 : vector<8x8xf32> to vector<1x8x8xf32>
    %31 = tpu.concatenate %27, %28, %29, %30 in 0 : vector<1x8x8xf32>, vector<1x8x8xf32>, vector<1x8x8xf32>, vector<1x8x8xf32> -> vector<4x8x8xf32>
    %32 = arith.truncf %31 : vector<4x8x8xf32> to vector<4x8x8xbf16>
    %33 = vector.extract_strided_slice %12 {offsets = [0, 0], sizes = [8, 8], strides = [1, 1]} : vector<8x32xf32> to vector<8x8xf32>
    %34 = vector.extract_strided_slice %12 {offsets = [0, 8], sizes = [8, 8], strides = [1, 1]} : vector<8x32xf32> to vector<8x8xf32>
    %35 = vector.extract_strided_slice %12 {offsets = [0, 16], sizes = [8, 8], strides = [1, 1]} : vector<8x32xf32> to vector<8x8xf32>
    %36 = vector.extract_strided_slice %12 {offsets = [0, 24], sizes = [8, 8], strides = [1, 1]} : vector<8x32xf32> to vector<8x8xf32>
    %37 = vector.shape_cast %33 : vector<8x8xf32> to vector<1x8x8xf32>
    %38 = vector.shape_cast %34 : vector<8x8xf32> to vector<1x8x8xf32>
    %39 = vector.shape_cast %35 : vector<8x8xf32> to vector<1x8x8xf32>
    %40 = vector.shape_cast %36 : vector<8x8xf32> to vector<1x8x8xf32>
    %41 = tpu.concatenate %37, %38, %39, %40 in 0 : vector<1x8x8xf32>, vector<1x8x8xf32>, vector<1x8x8xf32>, vector<1x8x8xf32> -> vector<4x8x8xf32>
    %42 = arith.truncf %41 : vector<4x8x8xf32> to vector<4x8x8xbf16>
    "tpu.trace_start"() <{level = 10 : i32, message = "hqd,hkd->hqk"}> : () -> ()
    %cst_7 = arith.constant dense<0.000000e+00> : vector<4x8x8xf32>
    %43 = tpu.matmul %22, %32, %cst_7 {dimension_numbers = #tpu.dot_dimension_numbers<[2], [2], [1], [1], [0, 0, 0, 1, 1, 1], [0], [0]>} : vector<4x8x8xbf16>, vector<4x8x8xbf16>, vector<4x8x8xf32> -> vector<4x8x8xf32>
    "tpu.trace_stop"() : () -> ()
    %44 = arith.index_cast %arg0 : i32 to index
    %c0_8 = arith.constant 0 : index
    %45 = vector.load %arg2[%44, %c0_8] : memref<2x8xi32, #tpu.memory_space<vmem>>, vector<1x8xi32>
    %c0_i32 = arith.constant 0 : i32
    %46 = vector.broadcast %c0_i32 : i32 to vector<1x8xi32>
    %47 = arith.cmpi sgt, %45, %46 : vector<1x8xi32>
    %cst_9 = arith.constant -1.000000e+09 : f32
    %cst_10 = arith.constant 0.000000e+00 : f32
    %48 = vector.broadcast %cst_9 : f32 to vector<1x8xf32>
    %49 = vector.broadcast %cst_10 : f32 to vector<1x8xf32>
    %50 = arith.select %47, %48, %49 : vector<1x8xi1>, vector<1x8xf32>
    %51 = vector.shape_cast %50 : vector<1x8xf32> to vector<1x1x8xf32>
    %52 = vector.broadcast %51 : vector<1x1x8xf32> to vector<4x8x8xf32>
    %53 = arith.addf %43, %52 : vector<4x8x8xf32>
    %cst_11 = arith.constant dense<0xFF800000> : vector<4x8xf32>
    %54 = vector.multi_reduction <maximumf>, %53, %cst_11 [2] : vector<4x8x8xf32> to vector<4x8xf32>
    %55 = vector.shape_cast %54 : vector<4x8xf32> to vector<4x8x1xf32>
    %56 = vector.broadcast %55 : vector<4x8x1xf32> to vector<4x8x8xf32>
    %57 = arith.subf %53, %56 : vector<4x8x8xf32>
    %58 = math.exp %57 : vector<4x8x8xf32>
    %cst_12 = arith.constant dense<0.000000e+00> : vector<4x8xf32>
    %59 = vector.multi_reduction <add>, %58, %cst_12 [2] : vector<4x8x8xf32> to vector<4x8xf32>
    %60 = vector.shape_cast %59 : vector<4x8xf32> to vector<4x8x1xf32>
    %61 = tpu.reciprocal %60 {approx = true} : vector<4x8x1xf32> -> vector<4x8x1xf32>
    %62 = vector.broadcast %61 : vector<4x8x1xf32> to vector<4x8x8xf32>
    %63 = arith.mulf %58, %62 : vector<4x8x8xf32>
    %64 = arith.truncf %63 : vector<4x8x8xf32> to vector<4x8x8xbf16>
    "tpu.trace_start"() <{level = 10 : i32, message = "hqk,hkd->hqd"}> : () -> ()
    %cst_13 = arith.constant dense<0.000000e+00> : vector<4x8x8xf32>
    %65 = tpu.matmul %64, %42, %cst_13 {dimension_numbers = #tpu.dot_dimension_numbers<[2], [1], [1], [2], [0, 0, 0, 1, 1, 2], [0], [0]>} : vector<4x8x8xbf16>, vector<4x8x8xbf16>, vector<4x8x8xf32> -> vector<4x8x8xf32>
    "tpu.trace_stop"() : () -> ()
    %66 = vector.extract_strided_slice %65 {offsets = [0, 0, 0], sizes = [1, 8, 8], strides = [1, 1, 1]} : vector<4x8x8xf32> to vector<1x8x8xf32>
    %67 = vector.shape_cast %66 : vector<1x8x8xf32> to vector<8x8xf32>
    %68 = vector.extract_strided_slice %65 {offsets = [1, 0, 0], sizes = [1, 8, 8], strides = [1, 1, 1]} : vector<4x8x8xf32> to vector<1x8x8xf32>
    %69 = vector.shape_cast %68 : vector<1x8x8xf32> to vector<8x8xf32>
    %70 = vector.extract_strided_slice %65 {offsets = [2, 0, 0], sizes = [1, 8, 8], strides = [1, 1, 1]} : vector<4x8x8xf32> to vector<1x8x8xf32>
    %71 = vector.shape_cast %70 : vector<1x8x8xf32> to vector<8x8xf32>
    %72 = vector.extract_strided_slice %65 {offsets = [3, 0, 0], sizes = [1, 8, 8], strides = [1, 1, 1]} : vector<4x8x8xf32> to vector<1x8x8xf32>
    %73 = vector.shape_cast %72 : vector<1x8x8xf32> to vector<8x8xf32>
    %74 = tpu.concatenate %67, %69, %71, %73 in 1 : vector<8x8xf32>, vector<8x8xf32>, vector<8x8xf32>, vector<8x8xf32> -> vector<8x32xf32>
    %75 = arith.truncf %74 : vector<8x32xf32> to vector<8x32xbf16>
    %c0_14 = arith.constant 0 : index
    %c0_15 = arith.constant 0 : index
    %76 = vector.load %arg5[%c0_14, %c0_15] : memref<32x32xbf16, #tpu.memory_space<vmem>>, vector<32x32xbf16>
    %cst_16 = arith.constant dense<0.000000e+00> : vector<8x32xf32>
    %77 = tpu.matmul %75, %76, %cst_16 {dimension_numbers = #tpu.dot_dimension_numbers<[1], [0], [0], [1], [0, 0, 1, 1], [], []>} : vector<8x32xbf16>, vector<32x32xbf16>, vector<8x32xf32> -> vector<8x32xf32>
    %c0_17 = arith.constant 0 : index
    %c0_18 = arith.constant 0 : index
    %78 = vector.load %arg6[%c0_17, %c0_18] : memref<1x32xf32, #tpu.memory_space<vmem>>, vector<1x32xf32>
    %79 = vector.broadcast %78 : vector<1x32xf32> to vector<8x32xf32>
    %80 = arith.addf %77, %79 : vector<8x32xf32>
    %81 = arith.addf %1, %80 : vector<8x32xf32>
    %c0_19 = arith.constant 0 : index
    %c0_20 = arith.constant 0 : index
    %82 = vector.load %arg7[%c0_19, %c0_20] : memref<1x32xf32, #tpu.memory_space<vmem>>, vector<1x32xf32>
    %c0_21 = arith.constant 0 : index
    %c0_22 = arith.constant 0 : index
    %83 = vector.load %arg8[%c0_21, %c0_22] : memref<1x32xf32, #tpu.memory_space<vmem>>, vector<1x32xf32>
    %cst_23 = arith.constant dense<0.000000e+00> : vector<8xf32>
    %84 = vector.multi_reduction <add>, %81, %cst_23 [1] : vector<8x32xf32> to vector<8xf32>
    %85 = vector.shape_cast %84 : vector<8xf32> to vector<8x1xf32>
    %cst_24 = arith.constant 3.200000e+01 : f32
    %86 = vector.broadcast %cst_24 : f32 to vector<8x1xf32>
    %87 = arith.divf %85, %86 : vector<8x1xf32>
    %88 = arith.mulf %81, %81 : vector<8x32xf32>
    %cst_25 = arith.constant dense<0.000000e+00> : vector<8xf32>
    %89 = vector.multi_reduction <add>, %88, %cst_25 [1] : vector<8x32xf32> to vector<8xf32>
    %90 = vector.shape_cast %89 : vector<8xf32> to vector<8x1xf32>
    %cst_26 = arith.constant 3.200000e+01 : f32
    %91 = vector.broadcast %cst_26 : f32 to vector<8x1xf32>
    %92 = arith.divf %90, %91 : vector<8x1xf32>
    %93 = arith.mulf %87, %87 : vector<8x1xf32>
    %94 = arith.subf %92, %93 : vector<8x1xf32>
    %cst_27 = arith.constant 0.000000e+00 : f32
    %95 = vector.broadcast %cst_27 : f32 to vector<8x1xf32>
    %96 = arith.maximumf %94, %95 : vector<8x1xf32>
    %97 = vector.broadcast %87 : vector<8x1xf32> to vector<8x32xf32>
    %98 = arith.subf %81, %97 : vector<8x32xf32>
    %cst_28 = arith.constant 9.99999974E-6 : f32
    %99 = vector.broadcast %cst_28 : f32 to vector<8x1xf32>
    %100 = arith.addf %96, %99 : vector<8x1xf32>
    %101 = math.rsqrt %100 : vector<8x1xf32>
    %102 = vector.broadcast %101 : vector<8x1xf32> to vector<8x32xf32>
    %103 = arith.mulf %98, %102 : vector<8x32xf32>
    %104 = vector.broadcast %82 : vector<1x32xf32> to vector<8x32xf32>
    %105 = arith.mulf %103, %104 : vector<8x32xf32>
    %106 = vector.broadcast %83 : vector<1x32xf32> to vector<8x32xf32>
    %107 = arith.addf %105, %106 : vector<8x32xf32>
    %108 = arith.truncf %107 : vector<8x32xf32> to vector<8x32xbf16>
    %c0_29 = arith.constant 0 : index
    %c0_30 = arith.constant 0 : index
    %109 = vector.load %arg9[%c0_29, %c0_30] : memref<32x64xbf16, #tpu.memory_space<vmem>>, vector<32x64xbf16>
    %cst_31 = arith.constant dense<0.000000e+00> : vector<8x64xf32>
    %110 = tpu.matmul %108, %109, %cst_31 {dimension_numbers = #tpu.dot_dimension_numbers<[1], [0], [0], [1], [0, 0, 1, 1], [], []>} : vector<8x32xbf16>, vector<32x64xbf16>, vector<8x64xf32> -> vector<8x64xf32>
    %c0_32 = arith.constant 0 : index
    %c0_33 = arith.constant 0 : index
    %111 = vector.load %arg10[%c0_32, %c0_33] : memref<1x64xf32, #tpu.memory_space<vmem>>, vector<1x64xf32>
    %112 = vector.broadcast %111 : vector<1x64xf32> to vector<8x64xf32>
    %113 = arith.addf %110, %112 : vector<8x64xf32>
    %cst_34 = arith.constant 0.000000e+00 : f32
    %114 = vector.broadcast %cst_34 : f32 to vector<8x64xf32>
    %115 = arith.maximumf %113, %114 : vector<8x64xf32>
    %116 = arith.truncf %115 : vector<8x64xf32> to vector<8x64xbf16>
    %c0_35 = arith.constant 0 : index
    %c0_36 = arith.constant 0 : index
    %117 = vector.load %arg11[%c0_35, %c0_36] : memref<64x32xbf16, #tpu.memory_space<vmem>>, vector<64x32xbf16>
    %cst_37 = arith.constant dense<0.000000e+00> : vector<8x32xf32>
    %118 = tpu.matmul %116, %117, %cst_37 {dimension_numbers = #tpu.dot_dimension_numbers<[1], [0], [0], [1], [0, 0, 1, 1], [], []>} : vector<8x64xbf16>, vector<64x32xbf16>, vector<8x32xf32> -> vector<8x32xf32>
    %c0_38 = arith.constant 0 : index
    %c0_39 = arith.constant 0 : index
    %119 = vector.load %arg12[%c0_38, %c0_39] : memref<1x32xf32, #tpu.memory_space<vmem>>, vector<1x32xf32>
    %120 = vector.broadcast %119 : vector<1x32xf32> to vector<8x32xf32>
    %121 = arith.addf %118, %120 : vector<8x32xf32>
    %122 = arith.addf %107, %121 : vector<8x32xf32>
    %c0_40 = arith.constant 0 : index
    %c0_41 = arith.constant 0 : index
    %123 = vector.load %arg13[%c0_40, %c0_41] : memref<1x32xf32, #tpu.memory_space<vmem>>, vector<1x32xf32>
    %c0_42 = arith.constant 0 : index
    %c0_43 = arith.constant 0 : index
    %124 = vector.load %arg14[%c0_42, %c0_43] : memref<1x32xf32, #tpu.memory_space<vmem>>, vector<1x32xf32>
    %cst_44 = arith.constant dense<0.000000e+00> : vector<8xf32>
    %125 = vector.multi_reduction <add>, %122, %cst_44 [1] : vector<8x32xf32> to vector<8xf32>
    %126 = vector.shape_cast %125 : vector<8xf32> to vector<8x1xf32>
    %cst_45 = arith.constant 3.200000e+01 : f32
    %127 = vector.broadcast %cst_45 : f32 to vector<8x1xf32>
    %128 = arith.divf %126, %127 : vector<8x1xf32>
    %129 = arith.mulf %122, %122 : vector<8x32xf32>
    %cst_46 = arith.constant dense<0.000000e+00> : vector<8xf32>
    %130 = vector.multi_reduction <add>, %129, %cst_46 [1] : vector<8x32xf32> to vector<8xf32>
    %131 = vector.shape_cast %130 : vector<8xf32> to vector<8x1xf32>
    %cst_47 = arith.constant 3.200000e+01 : f32
    %132 = vector.broadcast %cst_47 : f32 to vector<8x1xf32>
    %133 = arith.divf %131, %132 : vector<8x1xf32>
    %134 = arith.mulf %128, %128 : vector<8x1xf32>
    %135 = arith.subf %133, %134 : vector<8x1xf32>
    %cst_48 = arith.constant 0.000000e+00 : f32
    %136 = vector.broadcast %cst_48 : f32 to vector<8x1xf32>
    %137 = arith.maximumf %135, %136 : vector<8x1xf32>
    %138 = vector.broadcast %128 : vector<8x1xf32> to vector<8x32xf32>
    %139 = arith.subf %122, %138 : vector<8x32xf32>
    %cst_49 = arith.constant 9.99999974E-6 : f32
    %140 = vector.broadcast %cst_49 : f32 to vector<8x1xf32>
    %141 = arith.addf %137, %140 : vector<8x1xf32>
    %142 = math.rsqrt %141 : vector<8x1xf32>
    %143 = vector.broadcast %142 : vector<8x1xf32> to vector<8x32xf32>
    %144 = arith.mulf %139, %143 : vector<8x32xf32>
    %145 = vector.broadcast %123 : vector<1x32xf32> to vector<8x32xf32>
    %146 = arith.mulf %144, %145 : vector<8x32xf32>
    %147 = vector.broadcast %124 : vector<1x32xf32> to vector<8x32xf32>
    %148 = arith.addf %146, %147 : vector<8x32xf32>
    %c0_50 = arith.constant 0 : index
    %c0_51 = arith.constant 0 : index
    %c0_52 = arith.constant 0 : index
    %149 = vector.load %arg15[%c0_50, %c0_51, %c0_52] : memref<1x8x32xf32, #tpu.memory_space<vmem>>, vector<1x8x32xf32>
    %150 = vector.shape_cast %149 : vector<1x8x32xf32> to vector<8x32xf32>
    %151 = vector.shape_cast %148 : vector<8x32xf32> to vector<1x8x32xf32>
    tpu.vector_store %arg15[%c0_50, %c0_51, %c0_52], %151 {strides = array<i32>} : memref<1x8x32xf32, #tpu.memory_space<vmem>>, vector<1x8x32xf32>,
    return
  }
  func.func @transform_0(%arg0: i32) -> (i32, i32, i32) {
    %c0_i32 = arith.constant 0 : i32
    %c0_i32_0 = arith.constant 0 : i32
    %c0_i32_1 = arith.constant 0 : i32
    return %arg0, %c0_i32, %c0_i32_0 : i32, i32, i32
  }
  func.func @transform_1(%arg0: i32) -> (i32, i32) {
    %c0_i32 = arith.constant 0 : i32
    %c0_i32_0 = arith.constant 0 : i32
    %c0_i32_1 = arith.constant 0 : i32
    return %c0_i32, %c0_i32_0 : i32, i32
  }
  func.func @transform_2(%arg0: i32) -> (i32, i32) {
    %c0_i32 = arith.constant 0 : i32
    %c0_i32_0 = arith.constant 0 : i32
    %c0_i32_1 = arith.constant 0 : i32
    return %c0_i32, %c0_i32_0 : i32, i32
  }
  func.func @transform_3(%arg0: i32) -> (i32, i32) {
    %c0_i32 = arith.constant 0 : i32
    %c0_i32_0 = arith.constant 0 : i32
    %c0_i32_1 = arith.constant 0 : i32
    return %c0_i32, %c0_i32_0 : i32, i32
  }
  func.func @transform_4(%arg0: i32) -> (i32, i32) {
    %c0_i32 = arith.constant 0 : i32
    %c0_i32_0 = arith.constant 0 : i32
    %c0_i32_1 = arith.constant 0 : i32
    return %c0_i32, %c0_i32_0 : i32, i32
  }
  func.func @transform_5(%arg0: i32) -> (i32, i32) {
    %c0_i32 = arith.constant 0 : i32
    %c0_i32_0 = arith.constant 0 : i32
    %c0_i32_1 = arith.constant 0 : i32
    return %c0_i32, %c0_i32_0 : i32, i32
  }
  func.func @transform_6(%arg0: i32) -> (i32, i32) {
    %c0_i32 = arith.constant 0 : i32
    %c0_i32_0 = arith.constant 0 : i32
    %c0_i32_1 = arith.constant 0 : i32
    return %c0_i32, %c0_i32_0 : i32, i32
  }
  func.func @transform_7(%arg0: i32) -> (i32, i32) {
    %c0_i32 = arith.constant 0 : i32
    %c0_i32_0 = arith.constant 0 : i32
    %c0_i32_1 = arith.constant 0 : i32
    return %c0_i32, %c0_i32_0 : i32, i32
  }
  func.func @transform_8(%arg0: i32) -> (i32, i32) {
    %c0_i32 = arith.constant 0 : i32
    %c0_i32_0 = arith.constant 0 : i32
    %c0_i32_1 = arith.constant 0 : i32
    return %c0_i32, %c0_i32_0 : i32, i32
  }
  func.func @transform_9(%arg0: i32) -> (i32, i32) {
    %c0_i32 = arith.constant 0 : i32
    %c0_i32_0 = arith.constant 0 : i32
    %c0_i32_1 = arith.constant 0 : i32
    return %c0_i32, %c0_i32_0 : i32, i32
  }
  func.func @transform_10(%arg0: i32) -> (i32, i32) {
    %c0_i32 = arith.constant 0 : i32
    %c0_i32_0 = arith.constant 0 : i32
    %c0_i32_1 = arith.constant 0 : i32
    return %c0_i32, %c0_i32_0 : i32, i32
  }
  func.func @transform_11(%arg0: i32) -> (i32, i32) {
    %c0_i32 = arith.constant 0 : i32
    %c0_i32_0 = arith.constant 0 : i32
    %c0_i32_1 = arith.constant 0 : i32
    return %c0_i32, %c0_i32_0 : i32, i32
  }
  func.func @transform_12(%arg0: i32) -> (i32, i32) {
    %c0_i32 = arith.constant 0 : i32
    %c0_i32_0 = arith.constant 0 : i32
    %c0_i32_1 = arith.constant 0 : i32
    return %c0_i32, %c0_i32_0 : i32, i32
  }
  func.func @transform_13(%arg0: i32) -> (i32, i32) {
    %c0_i32 = arith.constant 0 : i32
    %c0_i32_0 = arith.constant 0 : i32
    %c0_i32_1 = arith.constant 0 : i32
    return %c0_i32, %c0_i32_0 : i32, i32
  }
  func.func @transform_14(%arg0: i32) -> (i32, i32, i32) {
    %c0_i32 = arith.constant 0 : i32
    %c0_i32_0 = arith.constant 0 : i32
    %c0_i32_1 = arith.constant 0 : i32
    return %arg0, %c0_i32, %c0_i32_0 : i32, i32, i32
  }
}

</mosaic_0001>

<llo_original>
// kernel: transformer_encoder_layer_forward.1
$region0: #{transformer_encoder_layer_forward.1}
  #allocation0 [shape = 'u32[]', space=smem, size = 0x4, offset = 0x4, fixed_abs, tag = 'smem constant byte address 0x4 - core index']
  #allocation1 [shape = 'u32[144,128]{1,0:T(1,128)}', space=vmem, size = 0x12000, scoped, tag = 'internal scratch']
  %s0 = inlined_call_operand.vmem [shape: f32[2,8,32], index: 0, kind: input, shape index: {}]
  %s1 = inlined_call_operand.vmem [shape: s32[2,8], index: 1, kind: input, shape index: {}]
  %s2 = inlined_call_operand.vmem [shape: bf16[32,96], index: 2, kind: input, shape index: {}]
  %s3 = inlined_call_operand.vmem [shape: f32[1,96], index: 3, kind: input, shape index: {}]
  %s4 = inlined_call_operand.vmem [shape: bf16[32,32], index: 4, kind: input, shape index: {}]
  %s5 = inlined_call_operand.vmem [shape: f32[1,32], index: 5, kind: input, shape index: {}]
  %s6 = inlined_call_operand.vmem [shape: f32[1,32], index: 6, kind: input, shape index: {}]
  %s7 = inlined_call_operand.vmem [shape: f32[1,32], index: 7, kind: input, shape index: {}]
  %s8 = inlined_call_operand.vmem [shape: bf16[32,64], index: 8, kind: input, shape index: {}]
  %s9 = inlined_call_operand.vmem [shape: f32[1,64], index: 9, kind: input, shape index: {}]
  %s10 = inlined_call_operand.vmem [shape: bf16[64,32], index: 10, kind: input, shape index: {}]
  %s11 = inlined_call_operand.vmem [shape: f32[1,32], index: 11, kind: input, shape index: {}]
  %s12 = inlined_call_operand.vmem [shape: f32[1,32], index: 12, kind: input, shape index: {}]
  %s13 = inlined_call_operand.vmem [shape: f32[1,32], index: 13, kind: input, shape index: {}]
  %s14 = inlined_call_operand.vmem [shape: f32[2,8,32], index: 14, kind: output, shape index: {}]
  %s15 = sld [smem:[#allocation0]]
  $region89: #{transformer_encoder_layer_forward.1} parent=0
    _
  %s17 = ssub.s32 1, %s15
  %s18 = scalar_select 0, %s17, %s15
  loop: start=0, step=1, limit=4
  $region2: #{transformer_encoder_layer_forward.1} parent=0 // loop_pre_header
    _
  $region3: #{transformer_encoder_layer_forward.1} parent=0 // loop_header
    %s20 = sphi 0, %s24
    %p21 = scmp.ge.s32.totalorder %s20, 4
    %s30 = sphi 0, %s32
    %s33 = sphi 0, %s30
    %s34 = sphi 0, %s33
    %s50 = sphi 0, %s34
    %s54 = sphi 0, %s54
    %s56 = sphi 0, %s54
    %s57 = sphi 0, %s56
    %s71 = sphi 0, %s57
    %s75 = sphi 0, %s75
    %s77 = sphi 0, %s75
    %s78 = sphi 0, %s77
    %s92 = sphi 0, %s78
    %s96 = sphi 0, %s96
    %s98 = sphi 0, %s96
    %s99 = sphi 0, %s98
    %s113 = sphi 0, %s99
    %s117 = sphi 0, %s117
    %s119 = sphi 0, %s117
    %s120 = sphi 0, %s119
    %s134 = sphi 0, %s120
    %s138 = sphi 0, %s138
    %s140 = sphi 0, %s138
    %s141 = sphi 0, %s140
    %s155 = sphi 0, %s141
    %s159 = sphi 0, %s159
    %s161 = sphi 0, %s159
    %s162 = sphi 0, %s161
    %s176 = sphi 0, %s162
    %s180 = sphi 0, %s180
    %s182 = sphi 0, %s180
    %s183 = sphi 0, %s182
    %s197 = sphi 0, %s183
    %s201 = sphi 0, %s201
    %s203 = sphi 0, %s201
    %s204 = sphi 0, %s203
    %s218 = sphi 0, %s204
    %s222 = sphi 0, %s222
    %s224 = sphi 0, %s222
    %s225 = sphi 0, %s224
    %s239 = sphi 0, %s225
    %s243 = sphi 0, %s243
    %s245 = sphi 0, %s243
    %s246 = sphi 0, %s245
    %s260 = sphi 0, %s246
    %s264 = sphi 0, %s264
    %s266 = sphi 0, %s264
    %s267 = sphi 0, %s266
    %s281 = sphi 0, %s267
    %s285 = sphi 0, %s285
    %s287 = sphi 0, %s285
    %s288 = sphi 0, %s287
    %s302 = sphi 0, %s288
    %s306 = sphi 0, %s306
    %s308 = sphi 0, %s306
    %s309 = sphi 0, %s308
    %s323 = sphi 0, %s309
    %s329 = sphi 0, %s331
    %s332 = sphi 0, %s329
    %s333 = sphi 0, %s332
    %s349 = sphi 0, %s333
  $region4: #{transformer_encoder_layer_forward.1} parent=0 // loop_header_branch
    %23 = sbr.rel (%p21) target = $region8
  $region5: #{transformer_encoder_layer_forward.1} parent=0 // loop_body
    %s25 = ssub.s32 %s20, 1
    %s26 = ssub.s32 %s20, 2
    %s27 = sadd.s32 %s20, 1
    %s28 = ssub.s32 %s20, %s27
    %p29 = scmp.eq.s32.totalorder %s28, 0
    %s31 = sadd.s32 %s30, 1
    %s32 = scalar_select %p29, %s30, %s31
    %p35 = pneg %p29
    %p36 = scmp.eq.s32.totalorder %s20, 1
    %p37 = por %p35, %p36
    %p38 = scmp.ne.s32.totalorder %s30, %s33
    %p39 = scmp.eq.s32.totalorder %s20, 0
    %p40 = por %p38, %p39
    %p41 = scmp.ne.s32.totalorder %s30, %s33
    %p42 = scmp.eq.s32.totalorder %s25, 1
    %p43 = por %p41, %p42
    %p44 = scmp.ne.s32.totalorder %s33, %s34
    %p45 = scmp.eq.s32.totalorder %s25, 0
    %p46 = por %p44, %p45
    %p47 = scmp.ne.s32.totalorder %s33, %s34
    %p48 = scmp.eq.s32.totalorder %s26, 1
    %p49 = por %p47, %p48
    %p51 = scmp.ne.s32.totalorder %s34, %s50
    %p52 = scmp.eq.s32.totalorder %s26, 0
    %p53 = por %p51, %p52
    %s55 = sadd.s32 %s54, 1
    %p58 = scmp.eq.s32.totalorder %s20, 1
    %p59 = scmp.ne.s32.totalorder %s54, %s56
    %p60 = scmp.eq.s32.totalorder %s20, 0
    %p61 = por %p59, %p60
    %p62 = scmp.ne.s32.totalorder %s54, %s56
    %p63 = scmp.eq.s32.totalorder %s25, 1
    %p64 = por %p62, %p63
    %p65 = scmp.ne.s32.totalorder %s56, %s57
    %p66 = scmp.eq.s32.totalorder %s25, 0
    %p67 = por %p65, %p66
    %p68 = scmp.ne.s32.totalorder %s56, %s57
    %p69 = scmp.eq.s32.totalorder %s26, 1
    %p70 = por %p68, %p69
    %p72 = scmp.ne.s32.totalorder %s57, %s71
    %p73 = scmp.eq.s32.totalorder %s26, 0
    %p74 = por %p72, %p73
    %s76 = sadd.s32 %s75, 1
    %p79 = scmp.eq.s32.totalorder %s20, 1
    %p80 = scmp.ne.s32.totalorder %s75, %s77
    %p81 = scmp.eq.s32.totalorder %s20, 0
    %p82 = por %p80, %p81
    %p83 = scmp.ne.s32.totalorder %s75, %s77
    %p84 = scmp.eq.s32.totalorder %s25, 1
    %p85 = por %p83, %p84
    %p86 = scmp.ne.s32.totalorder %s77, %s78
    %p87 = scmp.eq.s32.totalorder %s25, 0
    %p88 = por %p86, %p87
    %p89 = scmp.ne.s32.totalorder %s77, %s78
    %p90 = scmp.eq.s32.totalorder %s26, 1
    %p91 = por %p89, %p90
    %p93 = scmp.ne.s32.totalorder %s78, %s92
    %p94 = scmp.eq.s32.totalorder %s26, 0
    %p95 = por %p93, %p94
    %s97 = sadd.s32 %s96, 1
    %p100 = scmp.eq.s32.totalorder %s20, 1
    %p101 = scmp.ne.s32.totalorder %s96, %s98
    %p102 = scmp.eq.s32.totalorder %s20, 0
    %p103 = por %p101, %p102
    %p104 = scmp.ne.s32.totalorder %s96, %s98
    %p105 = scmp.eq.s32.totalorder %s25, 1
    %p106 = por %p104, %p105
    %p107 = scmp.ne.s32.totalorder %s98, %s99
    %p108 = scmp.eq.s32.totalorder %s25, 0
    %p109 = por %p107, %p108
    %p110 = scmp.ne.s32.totalorder %s98, %s99
    %p111 = scmp.eq.s32.totalorder %s26, 1
    %p112 = por %p110, %p111
    %p114 = scmp.ne.s32.totalorder %s99, %s113
    %p115 = scmp.eq.s32.totalorder %s26, 0
    %p116 = por %p114, %p115
    %s118 = sadd.s32 %s117, 1
    %p121 = scmp.eq.s32.totalorder %s20, 1
    %p122 = scmp.ne.s32.totalorder %s117, %s119
    %p123 = scmp.eq.s32.totalorder %s20, 0
    %p124 = por %p122, %p123
    %p125 = scmp.ne.s32.totalorder %s117, %s119
    %p126 = scmp.eq.s32.totalorder %s25, 1
    %p127 = por %p125, %p126
    %p128 = scmp.ne.s32.totalorder %s119, %s120
    %p129 = scmp.eq.s32.totalorder %s25, 0
    %p130 = por %p128, %p129
    %p131 = scmp.ne.s32.totalorder %s119, %s120
    %p132 = scmp.eq.s32.totalorder %s26, 1
    %p133 = por %p131, %p132
    %p135 = scmp.ne.s32.totalorder %s120, %s134
    %p136 = scmp.eq.s32.totalorder %s26, 0
    %p137 = por %p135, %p136
    %s139 = sadd.s32 %s138, 1
    %p142 = scmp.eq.s32.totalorder %s20, 1
    %p143 = scmp.ne.s32.totalorder %s138, %s140
    %p144 = scmp.eq.s32.totalorder %s20, 0
    %p145 = por %p143, %p144
    %p146 = scmp.ne.s32.totalorder %s138, %s140
    %p147 = scmp.eq.s32.totalorder %s25, 1
    %p148 = por %p146, %p147
    %p149 = scmp.ne.s32.totalorder %s140, %s141
    %p150 = scmp.eq.s32.totalorder %s25, 0
    %p151 = por %p149, %p150
    %p152 = scmp.ne.s32.totalorder %s140, %s141
    %p153 = scmp.eq.s32.totalorder %s26, 1
    %p154 = por %p152, %p153
    %p156 = scmp.ne.s32.totalorder %s141, %s155
    %p157 = scmp.eq.s32.totalorder %s26, 0
    %p158 = por %p156, %p157
    %s160 = sadd.s32 %s159, 1
    %p163 = scmp.eq.s32.totalorder %s20, 1
    %p164 = scmp.ne.s32.totalorder %s159, %s161
    %p165 = scmp.eq.s32.totalorder %s20, 0
    %p166 = por %p164, %p165
    %p167 = scmp.ne.s32.totalorder %s159, %s161
    %p168 = scmp.eq.s32.totalorder %s25, 1
    %p169 = por %p167, %p168
    %p170 = scmp.ne.s32.totalorder %s161, %s162
    %p171 = scmp.eq.s32.totalorder %s25, 0
    %p172 = por %p170, %p171
    %p173 = scmp.ne.s32.totalorder %s161, %s162
    %p174 = scmp.eq.s32.totalorder %s26, 1
    %p175 = por %p173, %p174
    %p177 = scmp.ne.s32.totalorder %s162, %s176
    %p178 = scmp.eq.s32.totalorder %s26, 0
    %p179 = por %p177, %p178
    %s181 = sadd.s32 %s180, 1
    %p184 = scmp.eq.s32.totalorder %s20, 1
    %p185 = scmp.ne.s32.totalorder %s180, %s182
    %p186 = scmp.eq.s32.totalorder %s20, 0
    %p187 = por %p185, %p186
    %p188 = scmp.ne.s32.totalorder %s180, %s182
    %p189 = scmp.eq.s32.totalorder %s25, 1
    %p190 = por %p188, %p189
    %p191 = scmp.ne.s32.totalorder %s182, %s183
    %p192 = scmp.eq.s32.totalorder %s25, 0
    %p193 = por %p191, %p192
    %p194 = scmp.ne.s32.totalorder %s182, %s183
    %p195 = scmp.eq.s32.totalorder %s26, 1
    %p196 = por %p194, %p195
    %p198 = scmp.ne.s32.totalorder %s183, %s197
    %p199 = scmp.eq.s32.totalorder %s26, 0
    %p200 = por %p198, %p199
    %s202 = sadd.s32 %s201, 1
    %p205 = scmp.eq.s32.totalorder %s20, 1
    %p206 = scmp.ne.s32.totalorder %s201, %s203
    %p207 = scmp.eq.s32.totalorder %s20, 0
    %p208 = por %p206, %p207
    %p209 = scmp.ne.s32.totalorder %s201, %s203
    %p210 = scmp.eq.s32.totalorder %s25, 1
    %p211 = por %p209, %p210
    %p212 = scmp.ne.s32.totalorder %s203, %s204
    %p213 = scmp.eq.s32.totalorder %s25, 0
    %p214 = por %p212, %p213
    %p215 = scmp.ne.s32.totalorder %s203, %s204
    %p216 = scmp.eq.s32.totalorder %s26, 1
    %p217 = por %p215, %p216
    %p219 = scmp.ne.s32.totalorder %s204, %s218
    %p220 = scmp.eq.s32.totalorder %s26, 0
    %p221 = por %p219, %p220
    %s223 = sadd.s32 %s222, 1
    %p226 = scmp.eq.s32.totalorder %s20, 1
    %p227 = scmp.ne.s32.totalorder %s222, %s224
    %p228 = scmp.eq.s32.totalorder %s20, 0
    %p229 = por %p227, %p228
    %p230 = scmp.ne.s32.totalorder %s222, %s224
    %p231 = scmp.eq.s32.totalorder %s25, 1
    %p232 = por %p230, %p231
    %p233 = scmp.ne.s32.totalorder %s224, %s225
    %p234 = scmp.eq.s32.totalorder %s25, 0
    %p235 = por %p233, %p234
    %p236 = scmp.ne.s32.totalorder %s224, %s225
    %p237 = scmp.eq.s32.totalorder %s26, 1
    %p238 = por %p236, %p237
    %p240 = scmp.ne.s32.totalorder %s225, %s239
    %p241 = scmp.eq.s32.totalorder %s26, 0
    %p242 = por %p240, %p241
    %s244 = sadd.s32 %s243, 1
    %p247 = scmp.eq.s32.totalorder %s20, 1
    %p248 = scmp.ne.s32.totalorder %s243, %s245
    %p249 = scmp.eq.s32.totalorder %s20, 0
    %p250 = por %p248, %p249
    %p251 = scmp.ne.s32.totalorder %s243, %s245
    %p252 = scmp.eq.s32.totalorder %s25, 1
    %p253 = por %p251, %p252
    %p254 = scmp.ne.s32.totalorder %s245, %s246
    %p255 = scmp.eq.s32.totalorder %s25, 0
    %p256 = por %p254, %p255
    %p257 = scmp.ne.s32.totalorder %s245, %s246
    %p258 = scmp.eq.s32.totalorder %s26, 1
    %p259 = por %p257, %p258
    %p261 = scmp.ne.s32.totalorder %s246, %s260
    %p262 = scmp.eq.s32.totalorder %s26, 0
    %p263 = por %p261, %p262
    %s265 = sadd.s32 %s264, 1
    %p268 = scmp.eq.s32.totalorder %s20, 1
    %p269 = scmp.ne.s32.totalorder %s264, %s266
    %p270 = scmp.eq.s32.totalorder %s20, 0
    %p271 = por %p269, %p270
    %p272 = scmp.ne.s32.totalorder %s264, %s266
    %p273 = scmp.eq.s32.totalorder %s25, 1
    %p274 = por %p272, %p273
    %p275 = scmp.ne.s32.totalorder %s266, %s267
    %p276 = scmp.eq.s32.totalorder %s25, 0
    %p277 = por %p275, %p276
    %p278 = scmp.ne.s32.totalorder %s266, %s267
    %p279 = scmp.eq.s32.totalorder %s26, 1
    %p280 = por %p278, %p279
    %p282 = scmp.ne.s32.totalorder %s267, %s281
    %p283 = scmp.eq.s32.totalorder %s26, 0
    %p284 = por %p282, %p283
    %s286 = sadd.s32 %s285, 1
    %p289 = scmp.eq.s32.totalorder %s20, 1
    %p290 = scmp.ne.s32.totalorder %s285, %s287
    %p291 = scmp.eq.s32.totalorder %s20, 0
    %p292 = por %p290, %p291
    %p293 = scmp.ne.s32.totalorder %s285, %s287
    %p294 = scmp.eq.s32.totalorder %s25, 1
    %p295 = por %p293, %p294
    %p296 = scmp.ne.s32.totalorder %s287, %s288
    %p297 = scmp.eq.s32.totalorder %s25, 0
    %p298 = por %p296, %p297
    %p299 = scmp.ne.s32.totalorder %s287, %s288
    %p300 = scmp.eq.s32.totalorder %s26, 1
    %p301 = por %p299, %p300
    %p303 = scmp.ne.s32.totalorder %s288, %s302
    %p304 = scmp.eq.s32.totalorder %s26, 0
    %p305 = por %p303, %p304
    %s307 = sadd.s32 %s306, 1
    %p310 = scmp.eq.s32.totalorder %s20, 1
    %p311 = scmp.ne.s32.totalorder %s306, %s308
    %p312 = scmp.eq.s32.totalorder %s20, 0
    %p313 = por %p311, %p312
    %p314 = scmp.ne.s32.totalorder %s306, %s308
    %p315 = scmp.eq.s32.totalorder %s25, 1
    %p316 = por %p314, %p315
    %p317 = scmp.ne.s32.totalorder %s308, %s309
    %p318 = scmp.eq.s32.totalorder %s25, 0
    %p319 = por %p317, %p318
    %p320 = scmp.ne.s32.totalorder %s308, %s309
    %p321 = scmp.eq.s32.totalorder %s26, 1
    %p322 = por %p320, %p321
    %p324 = scmp.ne.s32.totalorder %s309, %s323
    %p325 = scmp.eq.s32.totalorder %s26, 0
    %p326 = por %p324, %p325
    %s327 = ssub.s32 %s20, %s27
    %p328 = scmp.eq.s32.totalorder %s327, 0
    %s330 = sadd.s32 %s329, 1
    %s331 = scalar_select %p328, %s329, %s330
    %p334 = pneg %p328
    %p335 = scmp.eq.s32.totalorder %s20, 1
    %p336 = por %p334, %p335
    %p337 = scmp.ne.s32.totalorder %s329, %s332
    %p338 = scmp.eq.s32.totalorder %s20, 0
    %p339 = por %p337, %p338
    %p340 = scmp.ne.s32.totalorder %s329, %s332
    %p341 = scmp.eq.s32.totalorder %s25, 1
    %p342 = por %p340, %p341
    %p343 = scmp.ne.s32.totalorder %s332, %s333
    %p344 = scmp.eq.s32.totalorder %s25, 0
    %p345 = por %p343, %p344
    %p346 = scmp.ne.s32.totalorder %s332, %s333
    %p347 = scmp.eq.s32.totalorder %s26, 1
    %p348 = por %p346, %p347
    %p350 = scmp.ne.s32.totalorder %s333, %s349
    %p351 = scmp.eq.s32.totalorder %s26, 0
    %p352 = por %p350, %p351
    %p353 = scmp.le.s32.totalorder 1, %s20
    %p354 = scmp.lt.s32.totalorder %s20, 3
    %p355 = pnand %p353, %p354
    %p356 = pneg %p355
    // Predicated region
    $region9: #{transformer_encoder_layer_forward.1} parent=5 // pred_check
      _
    $region10: #{transformer_encoder_layer_forward.1} parent=5 // pred_check_branch
      %358 = sbr.rel (%p355) target = $region12
    $region11: #{transformer_encoder_layer_forward.1} parent=5 // pred_region
      %s359 = ssub.s32 %s20, 1
      // Predicated region
      $region13: #{transformer_encoder_layer_forward.1} parent=11 // pred_check
        %p360 = pneg %p67
      $region14: #{transformer_encoder_layer_forward.1} parent=11 // pred_check_branch
        %362 = sbr.rel (%p360) target = $region16
      $region15: #{transformer_encoder_layer_forward.1} parent=11 // pred_region
        _
      $region16: #{transformer_encoder_layer_forward.1} parent=11 // pred_fallthru
        _
      // Predicated region
      $region17: #{transformer_encoder_layer_forward.1} parent=11 // pred_check
        %p363 = pneg %p88
      $region18: #{transformer_encoder_layer_forward.1} parent=11 // pred_check_branch
        %365 = sbr.rel (%p363) target = $region20
      $region19: #{transformer_encoder_layer_forward.1} parent=11 // pred_region
        _
      $region20: #{transformer_encoder_layer_forward.1} parent=11 // pred_fallthru
        _
      // Predicated region
      $region21: #{transformer_encoder_layer_forward.1} parent=11 // pred_check
        %p366 = pneg %p109
      $region22: #{transformer_encoder_layer_forward.1} parent=11 // pred_check_branch
        %368 = sbr.rel (%p366) target = $region24
      $region23: #{transformer_encoder_layer_forward.1} parent=11 // pred_region
        _
      $region24: #{transformer_encoder_layer_forward.1} parent=11 // pred_fallthru
        _
      // Predicated region
      $region25: #{transformer_encoder_layer_forward.1} parent=11 // pred_check
        %p369 = pneg %p130
      $region26: #{transformer_encoder_layer_forward.1} parent=11 // pred_check_branch
        %371 = sbr.rel (%p369) target = $region28
      $region27: #{transformer_encoder_layer_forward.1} parent=11 // pred_region
        _
      $region28: #{transformer_encoder_layer_forward.1} parent=11 // pred_fallthru
        _
      // Predicated region
      $region29: #{transformer_encoder_layer_forward.1} parent=11 // pred_check
        %p372 = pneg %p151
      $region30: #{transformer_encoder_layer_forward.1} parent=11 // pred_check_branch
        %374 = sbr.rel (%p372) target = $region32
      $region31: #{transformer_encoder_layer_forward.1} parent=11 // pred_region
        _
      $region32: #{transformer_encoder_layer_forward.1} parent=11 // pred_fallthru
        _
      // Predicated region
      $region33: #{transformer_encoder_layer_forward.1} parent=11 // pred_check
        %p375 = pneg %p172
      $region34: #{transformer_encoder_layer_forward.1} parent=11 // pred_check_branch
        %377 = sbr.rel (%p375) target = $region36
      $region35: #{transformer_encoder_layer_forward.1} parent=11 // pred_region
        _
      $region36: #{transformer_encoder_layer_forward.1} parent=11 // pred_fallthru
        _
      // Predicated region
      $region37: #{transformer_encoder_layer_forward.1} parent=11 // pred_check
        %p378 = pneg %p193
      $region38: #{transformer_encoder_layer_forward.1} parent=11 // pred_check_branch
        %380 = sbr.rel (%p378) target = $region40
      $region39: #{transformer_encoder_layer_forward.1} parent=11 // pred_region
        _
      $region40: #{transformer_encoder_layer_forward.1} parent=11 // pred_fallthru
        _
      // Predicated region
      $region41: #{transformer_encoder_layer_forward.1} parent=11 // pred_check
        %p381 = pneg %p214
      $region42: #{transformer_encoder_layer_forward.1} parent=11 // pred_check_branch
        %383 = sbr.rel (%p381) target = $region44
      $region43: #{transformer_encoder_layer_forward.1} parent=11 // pred_region
        _
      $region44: #{transformer_encoder_layer_forward.1} parent=11 // pred_fallthru
        _
      // Predicated region
      $region45: #{transformer_encoder_layer_forward.1} parent=11 // pred_check
        %p384 = pneg %p235
      $region46: #{transformer_encoder_layer_forward.1} parent=11 // pred_check_branch
        %386 = sbr.rel (%p384) target = $region48
      $region47: #{transformer_encoder_layer_forward.1} parent=11 // pred_region
        _
      $region48: #{transformer_encoder_layer_forward.1} parent=11 // pred_fallthru
        _
      // Predicated region
      $region49: #{transformer_encoder_layer_forward.1} parent=11 // pred_check
        %p387 = pneg %p256
      $region50: #{transformer_encoder_layer_forward.1} parent=11 // pred_check_branch
        %389 = sbr.rel (%p387) target = $region52
      $region51: #{transformer_encoder_layer_forward.1} parent=11 // pred_region
        _
      $region52: #{transformer_encoder_layer_forward.1} parent=11 // pred_fallthru
        _
      // Predicated region
      $region53: #{transformer_encoder_layer_forward.1} parent=11 // pred_check
        %p390 = pneg %p277
      $region54: #{transformer_encoder_layer_forward.1} parent=11 // pred_check_branch
        %392 = sbr.rel (%p390) target = $region56
      $region55: #{transformer_encoder_layer_forward.1} parent=11 // pred_region
        _
      $region56: #{transformer_encoder_layer_forward.1} parent=11 // pred_fallthru
        _
      // Predicated region
      $region57: #{transformer_encoder_layer_forward.1} parent=11 // pred_check
        %p393 = pneg %p298
      $region58: #{transformer_encoder_layer_forward.1} parent=11 // pred_check_branch
        %395 = sbr.rel (%p393) target = $region60
      $region59: #{transformer_encoder_layer_forward.1} parent=11 // pred_region
        _
      $region60: #{transformer_encoder_layer_forward.1} parent=11 // pred_fallthru
        _
      // Predicated region
      $region61: #{transformer_encoder_layer_forward.1} parent=11 // pred_check
        %p396 = pneg %p319
      $region62: #{transformer_encoder_layer_forward.1} parent=11 // pred_check_branch
        %398 = sbr.rel (%p396) target = $region64
      $region63: #{transformer_encoder_layer_forward.1} parent=11 // pred_region
        _
      $region64: #{transformer_encoder_layer_forward.1} parent=11 // pred_fallthru
        _
    $region12: #{transformer_encoder_layer_forward.1} parent=5 // pred_fallthru
      _
    %p399 = scmp.lt.s32.totalorder %s20, 2
    // Predicated region
    $region65: #{transformer_encoder_layer_forward.1} parent=5 // pred_check
      %p400 = pneg %p399
    $region66: #{transformer_encoder_layer_forward.1} parent=5 // pred_check_branch
      %402 = sbr.rel (%p400) target = $region68
    $region67: #{transformer_encoder_layer_forward.1} parent=5 // pred_region
      // Predicated region
      $region69: #{transformer_encoder_layer_forward.1} parent=67 // pred_check
        %p403 = pneg %p40
      $region70: #{transformer_encoder_layer_forward.1} parent=67 // pred_check_branch
        %405 = sbr.rel (%p403) target = $region72
      $region71: #{transformer_encoder_layer_forward.1} parent=67 // pred_region
        %p406 = scmp.lt.s32.totalorder %s20, 1
        %s407 = scalar_select %p406, %s20, 1
        %s408 = smul.addr %s407, 8
        %s409 = scalar_lea.vmem %s0, %s408
      $region72: #{transformer_encoder_layer_forward.1} parent=67 // pred_fallthru
        _
    $region68: #{transformer_encoder_layer_forward.1} parent=5 // pred_fallthru
      _
    %p410 = scmp.le.s32.totalorder 1, %s20
    %p411 = scmp.lt.s32.totalorder %s20, 3
    %p412 = pnand %p410, %p411
    %p413 = pneg %p412
    // Predicated region
    $region73: #{transformer_encoder_layer_forward.1} parent=5 // pred_check
      _
    $region74: #{transformer_encoder_layer_forward.1} parent=5 // pred_check_branch
      %415 = sbr.rel (%p412) target = $region76
    $region75: #{transformer_encoder_layer_forward.1} parent=5 // pred_region
      %s416 = ssub.s32 %s20, 1
      %p417 = scmp.lt.s32.totalorder %s25, 1
      %s418 = scalar_select %p417, %s25, 1
      %s419 = smul.addr %s418, 8
      %s420 = scalar_lea.vmem %s0, %s419
      %p421 = pneg %p46
      %p422 = pneg %p43
      %p423 = pneg %p67
      %p424 = pneg %p64
      %p425 = pneg %p88
      %p426 = pneg %p85
      %p427 = pneg %p109
      %p428 = pneg %p106
      %p429 = pneg %p130
      %p430 = pneg %p127
      %p431 = pneg %p151
      %p432 = pneg %p148
      %p433 = pneg %p172
      %p434 = pneg %p169
      %p435 = pneg %p193
      %p436 = pneg %p190
      %p437 = pneg %p214
      %p438 = pneg %p211
      %p439 = pneg %p235
      %p440 = pneg %p232
      %p441 = pneg %p256
      %p442 = pneg %p253
      %p443 = pneg %p277
      %p444 = pneg %p274
      %p445 = pneg %p298
      %p446 = pneg %p295
      %p447 = pneg %p319
      %p448 = pneg %p316
      %p449 = pneg %p345
      %p450 = pneg %p342
      %p451 = scmp.lt.s32.totalorder %s25, 1
      %s452 = scalar_select %p451, %s25, 1
      %s453 = smul.addr %s452, 8
      %s454 = scalar_lea.vmem %s14, %s453
      %p455 = scmp.lt.s32.totalorder %s25, 1
      %s456 = scalar_select %p455, %s25, 1
      %s457 = smul.addr %s456, 8
      %s458 = scalar_lea.vmem %s0, %s457
      %p459 = scmp.lt.s32.totalorder %s25, 1
      %s460 = scalar_select %p459, %s25, 1
      %s461 = smul.addr %s460, 8
      %s462 = scalar_lea.vmem %s14, %s461
      %v464 = vld [vmem:[%s458] sm:$0xff]
      %v465 = vpack.c.bf16 %v464, %v464
      %v466 = vld [vmem:[%s2] sm:$0xf]
      %v467 = vld [vmem:[%s2 + $0x4] sm:$0xf]
      %v468 = vld [vmem:[%s2 + $0x8] sm:$0xf]
      %v469 = vld [vmem:[%s2 + $0xc] sm:$0xf]
      %v470 = vld [vmem:[%s3] sm:$0x1]
      %v472 = vlaneseq
      %v473 = vshrl.u32 %v472, 7
      %v474 = vsub.s32 0, %v473
      %v475 = vrot.slane %v470, %v474
      %v481 = vunpack.c.l.b16 %v466
      %v482 = vunpack.c.l.b16 %v467
      %v483 = vunpack.c.l.b16 %v468
      %v484 = vunpack.c.l.b16 %v469
      %v485 = vpack.c.b16 %v482, %v481
      %v486 = vpack.c.b16 %v484, %v483
      %vm489 = vcmask 261120
      %v491 = vsel %vm489, %v465, 0
      %493 = vmatprep.subr.bf16.mxu0 0
      %494 = vmatpush1.bf16.msra.mxu0 %v485
      %495 = vmatprep.subr.bf16.mxu0 0
      %496 = vmatpush1.bf16.msra.mxu0 %v486
      %497 = vmatprep.subr.bf16.mxu0 0
      %498 = vmatpush1.bf16.msra.mxu0 0
      %499 = vmatprep.subr.bf16.mxu0 0
      %500 = vmatpush1.bf16.msra.mxu0 0
      %501 = vmatprep.subr.bf16.mxu0 0
      %502 = vmatpush1.bf16.msra.mxu0 0
      %503 = vmatprep.subr.bf16.mxu0 0
      %504 = vmatpush1.bf16.msra.mxu0 0
      %505 = vmatprep.subr.bf16.mxu0 0
      %506 = vmatpush1.bf16.msra.mxu0 0
      %507 = vmatprep.subr.bf16.mxu0 0
      %508 = vmatpush1.bf16.msra.mxu0 0
      %509 = vmatprep.subr.bf16.mxu0 0
      %510 = vmatpush1.bf16.msra.mxu0 0
      %511 = vmatprep.subr.bf16.mxu0 0
      %512 = vmatpush1.bf16.msra.mxu0 0
      %513 = vmatprep.subr.bf16.mxu0 0
      %514 = vmatpush1.bf16.msra.mxu0 0
      %515 = vmatprep.subr.bf16.mxu0 0
      %516 = vmatpush1.bf16.msra.mxu0 0
      %517 = vmatprep.subr.bf16.mxu0 0
      %518 = vmatpush1.bf16.msra.mxu0 0
      %519 = vmatprep.subr.bf16.mxu0 0
      %520 = vmatpush1.bf16.msra.mxu0 0
      %521 = vmatprep.subr.bf16.mxu0 0
      %522 = vmatpush1.bf16.msra.mxu0 0
      %523 = vmatprep.subr.bf16.mxu0 0
      %524 = vmatpush1.bf16.msra.mxu0 0
      %525 = vmatprep.mubr.bf16.mxu0 0
      %526 = vmatmul.mubr.bf16.gmra.mrb[0].mxu0 %v491
      %v527 = vpop.f32.mrb[0].mxu0
      %v528 = vadd.f32 %v475, %v527
      %v529 = vpop.f32.mrb[0].mxu0
      %v530 = vpop.f32.mrb[0].mxu0
      %v531 = vpop.f32.mrb[0].mxu0
      %532 = vdwg.mxu0
      %v533 = vmul.f32 %v528, 0.35355338
      %535 = vrot.lane.b32.xlu0 %v533, 120
      %v536 = vpop.permute.xlu0 %535
      %538 = vrot.lane.b32.xlu0 %v533, 112
      %v539 = vpop.permute.xlu0 %538
      %541 = vrot.lane.b32.xlu0 %v533, 104
      %v542 = vpop.permute.xlu0 %541
      %v544 = vpack.c.bf16 %v533, %v533
      %v545 = vpack.c.bf16 %v536, %v536
      %v546 = vpack.c.bf16 %v539, %v539
      %v547 = vpack.c.bf16 %v542, %v542
      %549 = vrot.lane.b32.xlu0 %v528, 120
      %v550 = vpop.permute.xlu0 %549
      %552 = vrot.lane.b32.xlu0 %v528, 112
      %v553 = vpop.permute.xlu0 %552
      %555 = vrot.lane.b32.xlu0 %v528, 104
      %v556 = vpop.permute.xlu0 %555
      %v558 = vpack.c.bf16 %v528, %v528
      %v559 = vpack.c.bf16 %v550, %v550
      %v560 = vpack.c.bf16 %v553, %v553
      %v561 = vpack.c.bf16 %v556, %v556
      %s562 = scalar_lea.vmem %s1, %s25
      %v563 = vld [vmem:[%s562] sm:$0x1]
      %vm564 = vcmp.gt.s32.totalorder %v563, 0
      %v565 = vsel %vm564, -1e+09, 0.0
      %v566 = vlaneseq
      %v567 = vshrl.u32 %v566, 7
      %v568 = vsub.s32 0, %v567
      %v569 = vrot.slane %v565, %v568
      %571 = vrot.lane.b32.xlu0 %v558, 96
      %v572 = vpop.permute.xlu0 %571
      %vm573 = vcmask 64512
      %v575 = vsel %vm573, %v544, 0
      %v578 = vsel %vm573, %v572, 0
      %580 = vmatprep.subr.bf16.mxu0 0
      %581 = vmatpush1.bf16.xpose.msra.mxu0 %v578
      %582 = vmatprep.subr.bf16.mxu0 0
      %583 = vmatpush1.bf16.xpose.msra.mxu0 0
      %584 = vmatprep.subr.bf16.mxu0 0
      %585 = vmatpush1.bf16.xpose.msra.mxu0 0
      %586 = vmatprep.subr.bf16.mxu0 0
      %587 = vmatpush1.bf16.xpose.msra.mxu0 0
      %588 = vmatprep.subr.bf16.mxu0 0
      %589 = vmatpush1.bf16.xpose.msra.mxu0 0
      %590 = vmatprep.subr.bf16.mxu0 0
      %591 = vmatpush1.bf16.xpose.msra.mxu0 0
      %592 = vmatprep.subr.bf16.mxu0 0
      %593 = vmatpush1.bf16.xpose.msra.mxu0 0
      %594 = vmatprep.subr.bf16.mxu0 0
      %595 = vmatpush1.bf16.xpose.msra.mxu0 0
      %596 = vmatprep.subr.bf16.mxu0 0
      %597 = vmatpush1.bf16.xpose.msra.mxu0 0
      %598 = vmatprep.subr.bf16.mxu0 0
      %599 = vmatpush1.bf16.xpose.msra.mxu0 0
      %600 = vmatprep.subr.bf16.mxu0 0
      %601 = vmatpush1.bf16.xpose.msra.mxu0 0
      %602 = vmatprep.subr.bf16.mxu0 0
      %603 = vmatpush1.bf16.xpose.msra.mxu0 0
      %604 = vmatprep.subr.bf16.mxu0 0
      %605 = vmatpush1.bf16.xpose.msra.mxu0 0
      %606 = vmatprep.subr.bf16.mxu0 0
      %607 = vmatpush1.bf16.xpose.msra.mxu0 0
      %608 = vmatprep.subr.bf16.mxu0 0
      %609 = vmatpush1.bf16.xpose.msra.mxu0 0
      %610 = vmatprep.subr.bf16.mxu0 0
      %611 = vmatpush1.bf16.xpose.msra.mxu0 0
      %612 = vmatprep.mubr.bf16.mxu0 0
      %613 = vmatmul.mubr.bf16.gmra.mrb[0].mxu0 %v575
      %v614 = vpop.f32.mrb[0].mxu0
      %v615 = vadd.f32 %v569, %v614
      %v616 = vpop.f32.mrb[0].mxu0
      %v617 = vpop.f32.mrb[0].mxu0
      %v618 = vpop.f32.mrb[0].mxu0
      %619 = vdwg.mxu0
      %621 = vrot.lane.b32.xlu0 %v559, 96
      %v622 = vpop.permute.xlu0 %621
      %v624 = vsel %vm573, %v545, 0
      %v627 = vsel %vm573, %v622, 0
      %629 = vmatprep.subr.bf16.mxu0 0
      %630 = vmatpush1.bf16.xpose.msra.mxu0 %v627
      %631 = vmatprep.subr.bf16.mxu0 0
      %632 = vmatpush1.bf16.xpose.msra.mxu0 0
      %633 = vmatprep.subr.bf16.mxu0 0
      %634 = vmatpush1.bf16.xpose.msra.mxu0 0
      %635 = vmatprep.subr.bf16.mxu0 0
      %636 = vmatpush1.bf16.xpose.msra.mxu0 0
      %637 = vmatprep.subr.bf16.mxu0 0
      %638 = vmatpush1.bf16.xpose.msra.mxu0 0
      %639 = vmatprep.subr.bf16.mxu0 0
      %640 = vmatpush1.bf16.xpose.msra.mxu0 0
      %641 = vmatprep.subr.bf16.mxu0 0
      %642 = vmatpush1.bf16.xpose.msra.mxu0 0
      %643 = vmatprep.subr.bf16.mxu0 0
      %644 = vmatpush1.bf16.xpose.msra.mxu0 0
      %645 = vmatprep.subr.bf16.mxu0 0
      %646 = vmatpush1.bf16.xpose.msra.mxu0 0
      %647 = vmatprep.subr.bf16.mxu0 0
      %648 = vmatpush1.bf16.xpose.msra.mxu0 0
      %649 = vmatprep.subr.bf16.mxu0 0
      %650 = vmatpush1.bf16.xpose.msra.mxu0 0
      %651 = vmatprep.subr.bf16.mxu0 0
      %652 = vmatpush1.bf16.xpose.msra.mxu0 0
      %653 = vmatprep.subr.bf16.mxu0 0
      %654 = vmatpush1.bf16.xpose.msra.mxu0 0
      %655 = vmatprep.subr.bf16.mxu0 0
      %656 = vmatpush1.bf16.xpose.msra.mxu0 0
      %657 = vmatprep.subr.bf16.mxu0 0
      %658 = vmatpush1.bf16.xpose.msra.mxu0 0
      %659 = vmatprep.subr.bf16.mxu0 0
      %660 = vmatpush1.bf16.xpose.msra.mxu0 0
      %661 = vmatprep.mubr.bf16.mxu0 0
      %662 = vmatmul.mubr.bf16.gmra.mrb[0].mxu0 %v624
      %v663 = vpop.f32.mrb[0].mxu0
      %v664 = vadd.f32 %v569, %v663
      %v665 = vpop.f32.mrb[0].mxu0
      %v666 = vpop.f32.mrb[0].mxu0
      %v667 = vpop.f32.mrb[0].mxu0
      %668 = vdwg.mxu0
      %670 = vrot.lane.b32.xlu0 %v560, 96
      %v671 = vpop.permute.xlu0 %670
      %v673 = vsel %vm573, %v546, 0
      %v676 = vsel %vm573, %v671, 0
      %678 = vmatprep.subr.bf16.mxu0 0
      %679 = vmatpush1.bf16.xpose.msra.mxu0 %v676
      %680 = vmatprep.subr.bf16.mxu0 0
      %681 = vmatpush1.bf16.xpose.msra.mxu0 0
      %682 = vmatprep.subr.bf16.mxu0 0
      %683 = vmatpush1.bf16.xpose.msra.mxu0 0
      %684 = vmatprep.subr.bf16.mxu0 0
      %685 = vmatpush1.bf16.xpose.msra.mxu0 0
      %686 = vmatprep.subr.bf16.mxu0 0
      %687 = vmatpush1.bf16.xpose.msra.mxu0 0
      %688 = vmatprep.subr.bf16.mxu0 0
      %689 = vmatpush1.bf16.xpose.msra.mxu0 0
      %690 = vmatprep.subr.bf16.mxu0 0
      %691 = vmatpush1.bf16.xpose.msra.mxu0 0
      %692 = vmatprep.subr.bf16.mxu0 0
      %693 = vmatpush1.bf16.xpose.msra.mxu0 0
      %694 = vmatprep.subr.bf16.mxu0 0
      %695 = vmatpush1.bf16.xpose.msra.mxu0 0
      %696 = vmatprep.subr.bf16.mxu0 0
      %697 = vmatpush1.bf16.xpose.msra.mxu0 0
      %698 = vmatprep.subr.bf16.mxu0 0
      %699 = vmatpush1.bf16.xpose.msra.mxu0 0
      %700 = vmatprep.subr.bf16.mxu0 0
      %701 = vmatpush1.bf16.xpose.msra.mxu0 0
      %702 = vmatprep.subr.bf16.mxu0 0
      %703 = vmatpush1.bf16.xpose.msra.mxu0 0
      %704 = vmatprep.subr.bf16.mxu0 0
      %705 = vmatpush1.bf16.xpose.msra.mxu0 0
      %706 = vmatprep.subr.bf16.mxu0 0
      %707 = vmatpush1.bf16.xpose.msra.mxu0 0
      %708 = vmatprep.subr.bf16.mxu0 0
      %709 = vmatpush1.bf16.xpose.msra.mxu0 0
      %710 = vmatprep.mubr.bf16.mxu0 0
      %711 = vmatmul.mubr.bf16.gmra.mrb[0].mxu0 %v673
      %v712 = vpop.f32.mrb[0].mxu0
      %v713 = vadd.f32 %v569, %v712
      %v714 = vpop.f32.mrb[0].mxu0
      %v715 = vpop.f32.mrb[0].mxu0
      %v716 = vpop.f32.mrb[0].mxu0
      %717 = vdwg.mxu0
      %719 = vrot.lane.b32.xlu0 %v561, 96
      %v720 = vpop.permute.xlu0 %719
      %v722 = vsel %vm573, %v547, 0
      %v725 = vsel %vm573, %v720, 0
      %727 = vmatprep.subr.bf16.mxu0 0
      %728 = vmatpush1.bf16.xpose.msra.mxu0 %v725
      %729 = vmatprep.subr.bf16.mxu0 0
      %730 = vmatpush1.bf16.xpose.msra.mxu0 0
      %731 = vmatprep.subr.bf16.mxu0 0
      %732 = vmatpush1.bf16.xpose.msra.mxu0 0
      %733 = vmatprep.subr.bf16.mxu0 0
      %734 = vmatpush1.bf16.xpose.msra.mxu0 0
      %735 = vmatprep.subr.bf16.mxu0 0
      %736 = vmatpush1.bf16.xpose.msra.mxu0 0
      %737 = vmatprep.subr.bf16.mxu0 0
      %738 = vmatpush1.bf16.xpose.msra.mxu0 0
      %739 = vmatprep.subr.bf16.mxu0 0
      %740 = vmatpush1.bf16.xpose.msra.mxu0 0
      %741 = vmatprep.subr.bf16.mxu0 0
      %742 = vmatpush1.bf16.xpose.msra.mxu0 0
      %743 = vmatprep.subr.bf16.mxu0 0
      %744 = vmatpush1.bf16.xpose.msra.mxu0 0
      %745 = vmatprep.subr.bf16.mxu0 0
      %746 = vmatpush1.bf16.xpose.msra.mxu0 0
      %747 = vmatprep.subr.bf16.mxu0 0
      %748 = vmatpush1.bf16.xpose.msra.mxu0 0
      %749 = vmatprep.subr.bf16.mxu0 0
      %750 = vmatpush1.bf16.xpose.msra.mxu0 0
      %751 = vmatprep.subr.bf16.mxu0 0
      %752 = vmatpush1.bf16.xpose.msra.mxu0 0
      %753 = vmatprep.subr.bf16.mxu0 0
      %754 = vmatpush1.bf16.xpose.msra.mxu0 0
      %755 = vmatprep.subr.bf16.mxu0 0
      %756 = vmatpush1.bf16.xpose.msra.mxu0 0
      %757 = vmatprep.subr.bf16.mxu0 0
      %758 = vmatpush1.bf16.xpose.msra.mxu0 0
      %759 = vmatprep.mubr.bf16.mxu0 0
      %760 = vmatmul.mubr.bf16.gmra.mrb[0].mxu0 %v722
      %v761 = vpop.f32.mrb[0].mxu0
      %v762 = vadd.f32 %v569, %v761
      %v763 = vpop.f32.mrb[0].mxu0
      %v764 = vpop.f32.mrb[0].mxu0
      %v765 = vpop.f32.mrb[0].mxu0
      %766 = vdwg.mxu0
      %v767 = vsel %vm573, %v615, -inf
      %768 = vmax.xlane.f32.xlu0 %v767
      %v769 = vpop.xlane.xlu0 %768
      %v770 = vsel %vm573, %v664, -inf
      %771 = vmax.xlane.f32.xlu0 %v770
      %v772 = vpop.xlane.xlu0 %771
      %v773 = vsel %vm573, %v713, -inf
      %774 = vmax.xlane.f32.xlu0 %v773
      %v775 = vpop.xlane.xlu0 %774
      %v776 = vsel %vm573, %v762, -inf
      %777 = vmax.xlane.f32.xlu0 %v776
      %v778 = vpop.xlane.xlu0 %777
      %v779 = vsub.f32 %v615, %v769
      %v780 = vsub.f32 %v664, %v772
      %v781 = vsub.f32 %v713, %v775
      %v782 = vsub.f32 %v762, %v778
      %v783 = vmul.f32 %v779, 1.442695
      %v784 = vpow.pop %v783
      %v785 = vmul.f32 %v780, 1.442695
      %v786 = vpow.pop %v785
      %v787 = vmul.f32 %v781, 1.442695
      %v788 = vpow.pop %v787
      %v789 = vmul.f32 %v782, 1.442695
      %v790 = vpow.pop %v789
      %v791 = vsel %vm573, %v784, 0.0
      %792 = vadd.xlane.f32.xlu0 %v791
      %v793 = vpop.xlane.xlu0 %792
      %v794 = vsel %vm573, %v786, 0.0
      %795 = vadd.xlane.f32.xlu0 %v794
      %v796 = vpop.xlane.xlu0 %795
      %v797 = vsel %vm573, %v788, 0.0
      %798 = vadd.xlane.f32.xlu0 %v797
      %v799 = vpop.xlane.xlu0 %798
      %v800 = vsel %vm573, %v790, 0.0
      %801 = vadd.xlane.f32.xlu0 %v800
      %v802 = vpop.xlane.xlu0 %801
      %v803 = vrcp.pop %v793
      %v804 = vrcp.pop %v796
      %v805 = vrcp.pop %v799
      %v806 = vrcp.pop %v802
      %v807 = vmul.f32 %v784, %v803
      %v808 = vmul.f32 %v786, %v804
      %v809 = vmul.f32 %v788, %v805
      %v810 = vmul.f32 %v790, %v806
      %v811 = vpack.c.bf16 %v807, %v807
      %v812 = vpack.c.bf16 %v808, %v808
      %v813 = vpack.c.bf16 %v809, %v809
      %v814 = vpack.c.bf16 %v810, %v810
      %815 = vrot.lane.b32.xlu0 %v558, 64
      %v816 = vpop.permute.xlu0 %815
      %v818 = vsel %vm573, %v811, 0
      %vm820 = vcmask 1043456
      %v822 = vsel %vm820, %v816, 0
      %824 = vmatprep.subr.bf16.mxu0 0
      %825 = vmatpush1.bf16.msra.mxu0 %v822
      %826 = vmatprep.subr.bf16.mxu0 0
      %827 = vmatpush1.bf16.msra.mxu0 0
      %828 = vmatprep.subr.bf16.mxu0 0
      %829 = vmatpush1.bf16.msra.mxu0 0
      %830 = vmatprep.subr.bf16.mxu0 0
      %831 = vmatpush1.bf16.msra.mxu0 0
      %832 = vmatprep.subr.bf16.mxu0 0
      %833 = vmatpush1.bf16.msra.mxu0 0
      %834 = vmatprep.subr.bf16.mxu0 0
      %835 = vmatpush1.bf16.msra.mxu0 0
      %836 = vmatprep.subr.bf16.mxu0 0
      %837 = vmatpush1.bf16.msra.mxu0 0
      %838 = vmatprep.subr.bf16.mxu0 0
      %839 = vmatpush1.bf16.msra.mxu0 0
      %840 = vmatprep.subr.bf16.mxu0 0
      %841 = vmatpush1.bf16.msra.mxu0 0
      %842 = vmatprep.subr.bf16.mxu0 0
      %843 = vmatpush1.bf16.msra.mxu0 0
      %844 = vmatprep.subr.bf16.mxu0 0
      %845 = vmatpush1.bf16.msra.mxu0 0
      %846 = vmatprep.subr.bf16.mxu0 0
      %847 = vmatpush1.bf16.msra.mxu0 0
      %848 = vmatprep.subr.bf16.mxu0 0
      %849 = vmatpush1.bf16.msra.mxu0 0
      %850 = vmatprep.subr.bf16.mxu0 0
      %851 = vmatpush1.bf16.msra.mxu0 0
      %852 = vmatprep.subr.bf16.mxu0 0
      %853 = vmatpush1.bf16.msra.mxu0 0
      %854 = vmatprep.subr.bf16.mxu0 0
      %855 = vmatpush1.bf16.msra.mxu0 0
      %856 = vmatprep.mubr.bf16.mxu0 0
      %857 = vmatmul.mubr.bf16.gmra.mrb[0].mxu0 %v818
      %v858 = vpop.f32.mrb[0].mxu0
      %v859 = vadd.f32 0.0, %v858
      %v860 = vpop.f32.mrb[0].mxu0
      %v861 = vpop.f32.mrb[0].mxu0
      %v862 = vpop.f32.mrb[0].mxu0
      %863 = vdwg.mxu0
      %864 = vrot.lane.b32.xlu0 %v559, 64
      %v865 = vpop.permute.xlu0 %864
      %v867 = vsel %vm573, %v812, 0
      %v870 = vsel %vm820, %v865, 0
      %872 = vmatprep.subr.bf16.mxu0 0
      %873 = vmatpush1.bf16.msra.mxu0 %v870
      %874 = vmatprep.subr.bf16.mxu0 0
      %875 = vmatpush1.bf16.msra.mxu0 0
      %876 = vmatprep.subr.bf16.mxu0 0
      %877 = vmatpush1.bf16.msra.mxu0 0
      %878 = vmatprep.subr.bf16.mxu0 0
      %879 = vmatpush1.bf16.msra.mxu0 0
      %880 = vmatprep.subr.bf16.mxu0 0
      %881 = vmatpush1.bf16.msra.mxu0 0
      %882 = vmatprep.subr.bf16.mxu0 0
      %883 = vmatpush1.bf16.msra.mxu0 0
      %884 = vmatprep.subr.bf16.mxu0 0
      %885 = vmatpush1.bf16.msra.mxu0 0
      %886 = vmatprep.subr.bf16.mxu0 0
      %887 = vmatpush1.bf16.msra.mxu0 0
      %888 = vmatprep.subr.bf16.mxu0 0
      %889 = vmatpush1.bf16.msra.mxu0 0
      %890 = vmatprep.subr.bf16.mxu0 0
      %891 = vmatpush1.bf16.msra.mxu0 0
      %892 = vmatprep.subr.bf16.mxu0 0
      %893 = vmatpush1.bf16.msra.mxu0 0
      %894 = vmatprep.subr.bf16.mxu0 0
      %895 = vmatpush1.bf16.msra.mxu0 0
      %896 = vmatprep.subr.bf16.mxu0 0
      %897 = vmatpush1.bf16.msra.mxu0 0
      %898 = vmatprep.subr.bf16.mxu0 0
      %899 = vmatpush1.bf16.msra.mxu0 0
      %900 = vmatprep.subr.bf16.mxu0 0
      %901 = vmatpush1.bf16.msra.mxu0 0
      %902 = vmatprep.subr.bf16.mxu0 0
      %903 = vmatpush1.bf16.msra.mxu0 0
      %904 = vmatprep.mubr.bf16.mxu0 0
      %905 = vmatmul.mubr.bf16.gmra.mrb[0].mxu0 %v867
      %v906 = vpop.f32.mrb[0].mxu0
      %v907 = vadd.f32 0.0, %v906
      %v908 = vpop.f32.mrb[0].mxu0
      %v909 = vpop.f32.mrb[0].mxu0
      %v910 = vpop.f32.mrb[0].mxu0
      %911 = vdwg.mxu0
      %912 = vrot.lane.b32.xlu0 %v560, 64
      %v913 = vpop.permute.xlu0 %912
      %v915 = vsel %vm573, %v813, 0
      %v918 = vsel %vm820, %v913, 0
      %920 = vmatprep.subr.bf16.mxu0 0
      %921 = vmatpush1.bf16.msra.mxu0 %v918
      %922 = vmatprep.subr.bf16.mxu0 0
      %923 = vmatpush1.bf16.msra.mxu0 0
      %924 = vmatprep.subr.bf16.mxu0 0
      %925 = vmatpush1.bf16.msra.mxu0 0
      %926 = vmatprep.subr.bf16.mxu0 0
      %927 = vmatpush1.bf16.msra.mxu0 0
      %928 = vmatprep.subr.bf16.mxu0 0
      %929 = vmatpush1.bf16.msra.mxu0 0
      %930 = vmatprep.subr.bf16.mxu0 0
      %931 = vmatpush1.bf16.msra.mxu0 0
      %932 = vmatprep.subr.bf16.mxu0 0
      %933 = vmatpush1.bf16.msra.mxu0 0
      %934 = vmatprep.subr.bf16.mxu0 0
      %935 = vmatpush1.bf16.msra.mxu0 0
      %936 = vmatprep.subr.bf16.mxu0 0
      %937 = vmatpush1.bf16.msra.mxu0 0
      %938 = vmatprep.subr.bf16.mxu0 0
      %939 = vmatpush1.bf16.msra.mxu0 0
      %940 = vmatprep.subr.bf16.mxu0 0
      %941 = vmatpush1.bf16.msra.mxu0 0
      %942 = vmatprep.subr.bf16.mxu0 0
      %943 = vmatpush1.bf16.msra.mxu0 0
      %944 = vmatprep.subr.bf16.mxu0 0
      %945 = vmatpush1.bf16.msra.mxu0 0
      %946 = vmatprep.subr.bf16.mxu0 0
      %947 = vmatpush1.bf16.msra.mxu0 0
      %948 = vmatprep.subr.bf16.mxu0 0
      %949 = vmatpush1.bf16.msra.mxu0 0
      %950 = vmatprep.subr.bf16.mxu0 0
      %951 = vmatpush1.bf16.msra.mxu0 0
      %952 = vmatprep.mubr.bf16.mxu0 0
      %953 = vmatmul.mubr.bf16.gmra.mrb[0].mxu0 %v915
      %v954 = vpop.f32.mrb[0].mxu0
      %v955 = vadd.f32 0.0, %v954
      %v956 = vpop.f32.mrb[0].mxu0
      %v957 = vpop.f32.mrb[0].mxu0
      %v958 = vpop.f32.mrb[0].mxu0
      %959 = vdwg.mxu0
      %960 = vrot.lane.b32.xlu0 %v561, 64
      %v961 = vpop.permute.xlu0 %960
      %v963 = vsel %vm573, %v814, 0
      %v966 = vsel %vm820, %v961, 0
      %968 = vmatprep.subr.bf16.mxu0 0
      %969 = vmatpush1.bf16.msra.mxu0 %v966
      %970 = vmatprep.subr.bf16.mxu0 0
      %971 = vmatpush1.bf16.msra.mxu0 0
      %972 = vmatprep.subr.bf16.mxu0 0
      %973 = vmatpush1.bf16.msra.mxu0 0
      %974 = vmatprep.subr.bf16.mxu0 0
      %975 = vmatpush1.bf16.msra.mxu0 0
      %976 = vmatprep.subr.bf16.mxu0 0
      %977 = vmatpush1.bf16.msra.mxu0 0
      %978 = vmatprep.subr.bf16.mxu0 0
      %979 = vmatpush1.bf16.msra.mxu0 0
      %980 = vmatprep.subr.bf16.mxu0 0
      %981 = vmatpush1.bf16.msra.mxu0 0
      %982 = vmatprep.subr.bf16.mxu0 0
      %983 = vmatpush1.bf16.msra.mxu0 0
      %984 = vmatprep.subr.bf16.mxu0 0
      %985 = vmatpush1.bf16.msra.mxu0 0
      %986 = vmatprep.subr.bf16.mxu0 0
      %987 = vmatpush1.bf16.msra.mxu0 0
      %988 = vmatprep.subr.bf16.mxu0 0
      %989 = vmatpush1.bf16.msra.mxu0 0
      %990 = vmatprep.subr.bf16.mxu0 0
      %991 = vmatpush1.bf16.msra.mxu0 0
      %992 = vmatprep.subr.bf16.mxu0 0
      %993 = vmatpush1.bf16.msra.mxu0 0
      %994 = vmatprep.subr.bf16.mxu0 0
      %995 = vmatpush1.bf16.msra.mxu0 0
      %996 = vmatprep.subr.bf16.mxu0 0
      %997 = vmatpush1.bf16.msra.mxu0 0
      %998 = vmatprep.subr.bf16.mxu0 0
      %999 = vmatpush1.bf16.msra.mxu0 0
      %1000 = vmatprep.mubr.bf16.mxu0 0
      %1001 = vmatmul.mubr.bf16.gmra.mrb[0].mxu0 %v963
      %v1002 = vpop.f32.mrb[0].mxu0
      %v1003 = vadd.f32 0.0, %v1002
      %v1004 = vpop.f32.mrb[0].mxu0
      %v1005 = vpop.f32.mrb[0].mxu0
      %v1006 = vpop.f32.mrb[0].mxu0
      %1007 = vdwg.mxu0
      %1009 = vrot.lane.b32.xlu0 %v907, 8
      %v1010 = vpop.permute.xlu0 %1009
      %1013 = vrot.lane.b32.xlu0 %v955, 16
      %v1014 = vpop.permute.xlu0 %1013
      %1017 = vrot.lane.b32.xlu0 %v1003, 24
      %v1018 = vpop.permute.xlu0 %1017
      %v1020 = vsel %vm573, %v859, %v1010
      %vm1021 = vcmask 130048
      %v1022 = vsel %vm1021, %v1020, %v1014
      %vm1023 = vcmask 195584
      %v1024 = vsel %vm1023, %v1022, %v1018
      %v1025 = vpack.c.bf16 %v1024, %v1024
      %v1026 = vld [vmem:[%s4] sm:$0xf]
      %v1027 = vld [vmem:[%s4 + $0x4] sm:$0xf]
      %v1028 = vld [vmem:[%s4 + $0x8] sm:$0xf]
      %v1029 = vld [vmem:[%s4 + $0xc] sm:$0xf]
      %v1030 = vld [vmem:[%s5] sm:$0x1]
      %v1032 = vlaneseq
      %v1033 = vshrl.u32 %v1032, 7
      %v1034 = vsub.s32 0, %v1033
      %v1035 = vrot.slane %v1030, %v1034
      %v1041 = vunpack.c.l.b16 %v1026
      %v1042 = vunpack.c.l.b16 %v1027
      %v1043 = vunpack.c.l.b16 %v1028
      %v1044 = vunpack.c.l.b16 %v1029
      %v1045 = vpack.c.b16 %v1042, %v1041
      %v1046 = vpack.c.b16 %v1044, %v1043
      %v1050 = vsel %vm489, %v1025, 0
      %1052 = vmatprep.subr.bf16.mxu0 0
      %1053 = vmatpush1.bf16.msra.mxu0 %v1045
      %1054 = vmatprep.subr.bf16.mxu0 0
      %1055 = vmatpush1.bf16.msra.mxu0 %v1046
      %1056 = vmatprep.subr.bf16.mxu0 0
      %1057 = vmatpush1.bf16.msra.mxu0 0
      %1058 = vmatprep.subr.bf16.mxu0 0
      %1059 = vmatpush1.bf16.msra.mxu0 0
      %1060 = vmatprep.subr.bf16.mxu0 0
      %1061 = vmatpush1.bf16.msra.mxu0 0
      %1062 = vmatprep.subr.bf16.mxu0 0
      %1063 = vmatpush1.bf16.msra.mxu0 0
      %1064 = vmatprep.subr.bf16.mxu0 0
      %1065 = vmatpush1.bf16.msra.mxu0 0
      %1066 = vmatprep.subr.bf16.mxu0 0
      %1067 = vmatpush1.bf16.msra.mxu0 0
      %1068 = vmatprep.subr.bf16.mxu0 0
      %1069 = vmatpush1.bf16.msra.mxu0 0
      %1070 = vmatprep.subr.bf16.mxu0 0
      %1071 = vmatpush1.bf16.msra.mxu0 0
      %1072 = vmatprep.subr.bf16.mxu0 0
      %1073 = vmatpush1.bf16.msra.mxu0 0
      %1074 = vmatprep.subr.bf16.mxu0 0
      %1075 = vmatpush1.bf16.msra.mxu0 0
      %1076 = vmatprep.subr.bf16.mxu0 0
      %1077 = vmatpush1.bf16.msra.mxu0 0
      %1078 = vmatprep.subr.bf16.mxu0 0
      %1079 = vmatpush1.bf16.msra.mxu0 0
      %1080 = vmatprep.subr.bf16.mxu0 0
      %1081 = vmatpush1.bf16.msra.mxu0 0
      %1082 = vmatprep.subr.bf16.mxu0 0
      %1083 = vmatpush1.bf16.msra.mxu0 0
      %1084 = vmatprep.mubr.bf16.mxu0 0
      %1085 = vmatmul.mubr.bf16.gmra.mrb[0].mxu0 %v1050
      %v1086 = vpop.f32.mrb[0].mxu0
      %v1087 = vadd.f32 %v1035, %v1086
      %v1088 = vpop.f32.mrb[0].mxu0
      %v1089 = vpop.f32.mrb[0].mxu0
      %v1090 = vpop.f32.mrb[0].mxu0
      %1091 = vdwg.mxu0
      %v1092 = vadd.f32 %v464, %v1087
      %v1093 = vld [vmem:[%s6] sm:$0x1]
      %v1094 = vld [vmem:[%s7] sm:$0x1]
      %v1095 = vsel %vm489, %v1092, 0.0
      %1096 = vadd.xlane.f32.xlu0 %v1095
      %v1097 = vpop.xlane.xlu0 %1096
      %v1098 = vrcp.pop 32.0
      %v1099 = vmul.f32 %v1097, %v1098
      %v1100 = vmul.f32 %v1092, %v1092
      %v1101 = vsel %vm489, %v1100, 0.0
      %1102 = vadd.xlane.f32.xlu0 %v1101
      %v1103 = vpop.xlane.xlu0 %1102
      %v1104 = vmul.f32 %v1103, %v1098
      %v1105 = vmul.f32 %v1099, %v1099
      %v1106 = vsub.f32 %v1104, %v1105
      %v1107 = vmax.f32 %v1106, 0.0
      %v1108 = vsub.f32 %v1092, %v1099
      %v1109 = vadd.f32 %v1107, 1e-05
      %v1110 = vrsqrt.pop %v1109
      %v1111 = vmul.f32 %v1108, %v1110
      %v1113 = vlaneseq
      %v1114 = vshrl.u32 %v1113, 7
      %v1115 = vsub.s32 0, %v1114
      %v1116 = vrot.slane %v1093, %v1115
      %v1118 = vmul.f32 %v1111, %v1116
      %v1120 = vlaneseq
      %v1121 = vshrl.u32 %v1120, 7
      %v1122 = vsub.s32 0, %v1121
      %v1123 = vrot.slane %v1094, %v1122
      %v1125 = vadd.f32 %v1118, %v1123
      %v1126 = vpack.c.bf16 %v1125, %v1125
      %v1127 = vld [vmem:[%s8] sm:$0xf]
      %v1128 = vld [vmem:[%s8 + $0x4] sm:$0xf]
      %v1129 = vld [vmem:[%s8 + $0x8] sm:$0xf]
      %v1130 = vld [vmem:[%s8 + $0xc] sm:$0xf]
      %v1131 = vld [vmem:[%s9] sm:$0x1]
      %v1133 = vlaneseq
      %v1134 = vshrl.u32 %v1133, 7
      %v1135 = vsub.s32 0, %v1134
      %v1136 = vrot.slane %v1131, %v1135
      %v1142 = vunpack.c.l.b16 %v1127
      %v1143 = vunpack.c.l.b16 %v1128
      %v1144 = vunpack.c.l.b16 %v1129
      %v1145 = vunpack.c.l.b16 %v1130
      %v1146 = vpack.c.b16 %v1143, %v1142
      %v1147 = vpack.c.b16 %v1145, %v1144
      %v1151 = vsel %vm489, %v1126, 0
      %1153 = vmatprep.subr.bf16.mxu0 0
      %1154 = vmatpush1.bf16.msra.mxu0 %v1146
      %1155 = vmatprep.subr.bf16.mxu0 0
      %1156 = vmatpush1.bf16.msra.mxu0 %v1147
      %1157 = vmatprep.subr.bf16.mxu0 0
      %1158 = vmatpush1.bf16.msra.mxu0 0
      %1159 = vmatprep.subr.bf16.mxu0 0
      %1160 = vmatpush1.bf16.msra.mxu0 0
      %1161 = vmatprep.subr.bf16.mxu0 0
      %1162 = vmatpush1.bf16.msra.mxu0 0
      %1163 = vmatprep.subr.bf16.mxu0 0
      %1164 = vmatpush1.bf16.msra.mxu0 0
      %1165 = vmatprep.subr.bf16.mxu0 0
      %1166 = vmatpush1.bf16.msra.mxu0 0
      %1167 = vmatprep.subr.bf16.mxu0 0
      %1168 = vmatpush1.bf16.msra.mxu0 0
      %1169 = vmatprep.subr.bf16.mxu0 0
      %1170 = vmatpush1.bf16.msra.mxu0 0
      %1171 = vmatprep.subr.bf16.mxu0 0
      %1172 = vmatpush1.bf16.msra.mxu0 0
      %1173 = vmatprep.subr.bf16.mxu0 0
      %1174 = vmatpush1.bf16.msra.mxu0 0
      %1175 = vmatprep.subr.bf16.mxu0 0
      %1176 = vmatpush1.bf16.msra.mxu0 0
      %1177 = vmatprep.subr.bf16.mxu0 0
      %1178 = vmatpush1.bf16.msra.mxu0 0
      %1179 = vmatprep.subr.bf16.mxu0 0
      %1180 = vmatpush1.bf16.msra.mxu0 0
      %1181 = vmatprep.subr.bf16.mxu0 0
      %1182 = vmatpush1.bf16.msra.mxu0 0
      %1183 = vmatprep.subr.bf16.mxu0 0
      %1184 = vmatpush1.bf16.msra.mxu0 0
      %1185 = vmatprep.mubr.bf16.mxu0 0
      %1186 = vmatmul.mubr.bf16.gmra.mrb[0].mxu0 %v1151
      %v1187 = vpop.f32.mrb[0].mxu0
      %v1188 = vadd.f32 %v1136, %v1187
      %v1189 = vpop.f32.mrb[0].mxu0
      %v1190 = vpop.f32.mrb[0].mxu0
      %v1191 = vpop.f32.mrb[0].mxu0
      %1192 = vdwg.mxu0
      %v1193 = vmax.f32 %v1188, 0.0
      %v1194 = vpack.c.bf16 %v1193, %v1193
      %v1195 = vld [vmem:[%s10] sm:$0xf]
      %v1196 = vld [vmem:[%s10 + $0x4] sm:$0xf]
      %v1197 = vld [vmem:[%s10 + $0x8] sm:$0xf]
      %v1198 = vld [vmem:[%s10 + $0xc] sm:$0xf]
      %v1199 = vld [vmem:[%s10 + $0x10] sm:$0xf]
      %v1200 = vld [vmem:[%s10 + $0x14] sm:$0xf]
      %v1201 = vld [vmem:[%s10 + $0x18] sm:$0xf]
      %v1202 = vld [vmem:[%s10 + $0x1c] sm:$0xf]
      %v1203 = vld [vmem:[%s11] sm:$0x1]
      %v1205 = vlaneseq
      %v1206 = vshrl.u32 %v1205, 7
      %v1207 = vsub.s32 0, %v1206
      %v1208 = vrot.slane %v1203, %v1207
      %v1218 = vunpack.c.l.b16 %v1195
      %v1219 = vunpack.c.l.b16 %v1196
      %v1220 = vunpack.c.l.b16 %v1197
      %v1221 = vunpack.c.l.b16 %v1198
      %v1222 = vunpack.c.l.b16 %v1199
      %v1223 = vunpack.c.l.b16 %v1200
      %v1224 = vunpack.c.l.b16 %v1201
      %v1225 = vunpack.c.l.b16 %v1202
      %v1226 = vpack.c.b16 %v1219, %v1218
      %v1227 = vpack.c.b16 %v1221, %v1220
      %v1228 = vpack.c.b16 %v1223, %v1222
      %v1229 = vpack.c.b16 %v1225, %v1224
      %vm1234 = vcmask 523264
      %v1236 = vsel %vm1234, %v1194, 0
      %1238 = vmatprep.subr.bf16.mxu0 0
      %1239 = vmatpush1.bf16.msra.mxu0 %v1226
      %1240 = vmatprep.subr.bf16.mxu0 0
      %1241 = vmatpush1.bf16.msra.mxu0 %v1227
      %1242 = vmatprep.subr.bf16.mxu0 0
      %1243 = vmatpush1.bf16.msra.mxu0 %v1228
      %1244 = vmatprep.subr.bf16.mxu0 0
      %1245 = vmatpush1.bf16.msra.mxu0 %v1229
      %1246 = vmatprep.subr.bf16.mxu0 0
      %1247 = vmatpush1.bf16.msra.mxu0 0
      %1248 = vmatprep.subr.bf16.mxu0 0
      %1249 = vmatpush1.bf16.msra.mxu0 0
      %1250 = vmatprep.subr.bf16.mxu0 0
      %1251 = vmatpush1.bf16.msra.mxu0 0
      %1252 = vmatprep.subr.bf16.mxu0 0
      %1253 = vmatpush1.bf16.msra.mxu0 0
      %1254 = vmatprep.subr.bf16.mxu0 0
      %1255 = vmatpush1.bf16.msra.mxu0 0
      %1256 = vmatprep.subr.bf16.mxu0 0
      %1257 = vmatpush1.bf16.msra.mxu0 0
      %1258 = vmatprep.subr.bf16.mxu0 0
      %1259 = vmatpush1.bf16.msra.mxu0 0
      %1260 = vmatprep.subr.bf16.mxu0 0
      %1261 = vmatpush1.bf16.msra.mxu0 0
      %1262 = vmatprep.subr.bf16.mxu0 0
      %1263 = vmatpush1.bf16.msra.mxu0 0
      %1264 = vmatprep.subr.bf16.mxu0 0
      %1265 = vmatpush1.bf16.msra.mxu0 0
      %1266 = vmatprep.subr.bf16.mxu0 0
      %1267 = vmatpush1.bf16.msra.mxu0 0
      %1268 = vmatprep.subr.bf16.mxu0 0
      %1269 = vmatpush1.bf16.msra.mxu0 0
      %1270 = vmatprep.mubr.bf16.mxu0 0
      %1271 = vmatmul.mubr.bf16.gmra.mrb[0].mxu0 %v1236
      %v1272 = vpop.f32.mrb[0].mxu0
      %v1273 = vadd.f32 %v1208, %v1272
      %v1274 = vpop.f32.mrb[0].mxu0
      %v1275 = vpop.f32.mrb[0].mxu0
      %v1276 = vpop.f32.mrb[0].mxu0
      %1277 = vdwg.mxu0
      %v1278 = vadd.f32 %v1125, %v1273
      %v1279 = vld [vmem:[%s12] sm:$0x1]
      %v1280 = vld [vmem:[%s13] sm:$0x1]
      %v1281 = vsel %vm489, %v1278, 0.0
      %1282 = vadd.xlane.f32.xlu0 %v1281
      %v1283 = vpop.xlane.xlu0 %1282
      %v1284 = vmul.f32 %v1283, %v1098
      %v1285 = vmul.f32 %v1278, %v1278
      %v1286 = vsel %vm489, %v1285, 0.0
      %1287 = vadd.xlane.f32.xlu0 %v1286
      %v1288 = vpop.xlane.xlu0 %1287
      %v1289 = vmul.f32 %v1288, %v1098
      %v1290 = vmul.f32 %v1284, %v1284
      %v1291 = vsub.f32 %v1289, %v1290
      %v1292 = vmax.f32 %v1291, 0.0
      %v1293 = vsub.f32 %v1278, %v1284
      %v1294 = vadd.f32 %v1292, 1e-05
      %v1295 = vrsqrt.pop %v1294
      %v1296 = vmul.f32 %v1293, %v1295
      %v1298 = vlaneseq
      %v1299 = vshrl.u32 %v1298, 7
      %v1300 = vsub.s32 0, %v1299
      %v1301 = vrot.slane %v1279, %v1300
      %v1303 = vmul.f32 %v1296, %v1301
      %v1305 = vlaneseq
      %v1306 = vshrl.u32 %v1305, 7
      %v1307 = vsub.s32 0, %v1306
      %v1308 = vrot.slane %v1280, %v1307
      %v1310 = vadd.f32 %v1303, %v1308
      %1311 = vst.msk [vmem:[%s462] sm:$0xff] %vm489, %v1310
      %p1312 = scmp.lt.s32.totalorder %s25, 1
      %s1313 = scalar_select %p1312, %s25, 1
      %s1314 = smul.addr %s1313, 8
      %s1315 = scalar_lea.vmem %s14, %s1314
      // Predicated region
      $region77: #{transformer_encoder_layer_forward.1} parent=75 // pred_check
        %p1316 = pneg %p342
      $region78: #{transformer_encoder_layer_forward.1} parent=75 // pred_check_branch
        %1318 = sbr.rel (%p1316) target = $region80
      $region79: #{transformer_encoder_layer_forward.1} parent=75 // pred_region
        _
      $region80: #{transformer_encoder_layer_forward.1} parent=75 // pred_fallthru
        _
    $region76: #{transformer_encoder_layer_forward.1} parent=5 // pred_fallthru
      _
    %p1319 = scmp.le.s32.totalorder 2, %s20
    // Predicated region
    $region81: #{transformer_encoder_layer_forward.1} parent=5 // pred_check
      %p1320 = pneg %p1319
    $region82: #{transformer_encoder_layer_forward.1} parent=5 // pred_check_branch
      %1322 = sbr.rel (%p1320) target = $region84
    $region83: #{transformer_encoder_layer_forward.1} parent=5 // pred_region
      %s1323 = ssub.s32 %s20, 2
      // Predicated region
      $region85: #{transformer_encoder_layer_forward.1} parent=83 // pred_check
        %p1324 = pneg %p348
      $region86: #{transformer_encoder_layer_forward.1} parent=83 // pred_check_branch
        %1326 = sbr.rel (%p1324) target = $region88
      $region87: #{transformer_encoder_layer_forward.1} parent=83 // pred_region
        %p1327 = scmp.lt.s32.totalorder %s26, 1
        %s1328 = scalar_select %p1327, %s26, 1
        %s1329 = smul.addr %s1328, 8
        %s1330 = scalar_lea.vmem %s14, %s1329
      $region88: #{transformer_encoder_layer_forward.1} parent=83 // pred_fallthru
        _
    $region84: #{transformer_encoder_layer_forward.1} parent=5 // pred_fallthru
      _
  $region6: #{transformer_encoder_layer_forward.1} parent=0 // loop_footer
    %s24 = sadd.s32 1, %s20
  $region7: #{transformer_encoder_layer_forward.1} parent=0 // loop_footer_branch
    %19 = sbr.rel target = $region3
  $region8: #{transformer_encoder_layer_forward.1} parent=0 // loop_exit
    _

</llo_original>
